<compile_context>
chip_gen: v7x
topology: tpu7x:2x2x1
jax: 0.10.0
libtpu: 0.0.40
codegen_flags: <defaults>
</compile_context>

<pallas_src>
import math
import numpy as np
import jax
import jax.numpy as jnp
from jax.experimental import pallas as pl
from jax.experimental.pallas import tpu as pltpu

# ----- small, synthetic config (consistent with the module's forward) -----
B, S, D, H = 2, 8, 64, 4
HD = D // H                                          # head_dim
BS = B * S                                           # batch folded into rows
HIDDEN = 256 * ((int(2 * D / 3) + 256 - 1) // 256)   # SwiGLU hidden (=256)
EPS = 1e-5          # RMSNorm eps
QK_EPS = 1e-5       # qk LayerNorm eps
SCALE = 1.0 / math.sqrt(HD)
ROPE_THETA = 10000.0
NEG_INF = -1e9


def _rmsnorm(x, w, eps):
    ms = jnp.mean(x * x, axis=-1, keepdims=True)
    return x * jax.lax.rsqrt(ms + eps) * w


def block_kernel(x_ref, wqk_ref, wv_ref, wo_ref, w13_ref, w2_ref,
                 norm_ref, cs_ref, aux_ref, out_ref):
    x = x_ref[...]                          # (BS, D) f32, batch folded into rows

    # packed small params
    normp = norm_ref[...]                   # (8, 2D)
    qk_w = normp[0:1, :]                    # (1, 2D)  qk-LN weight (q heads | k heads)
    qk_b = normp[1:2, :]                    # (1, 2D)  qk-LN bias
    ln1_w = normp[2:3, 0:D]                 # (1, D)
    ln2_w = normp[3:4, 0:D]                 # (1, D)
    cos2 = cs_ref[0:BS, :]                  # (BS, 2D) RoPE cos, tiled per head & batch
    sin2 = cs_ref[BS:2 * BS, :]             # (BS, 2D)
    m2 = aux_ref[:, 0:2 * D]                # (2D, 2D) per-head block-mean matrix
    psgn2 = aux_ref[:, 2 * D:4 * D]         # (2D, 2D) signed pair-swap matrix

    # ---------------- attention branch (pre-norm) ----------------
    h1 = _rmsnorm(x, ln1_w, EPS)
    qk = jnp.dot(h1, wqk_ref[...], preferred_element_type=jnp.float32)   # (BS, 2D)
    xv = jnp.dot(h1, wv_ref[...], preferred_element_type=jnp.float32)    # (BS, D)

    # per-head LayerNorm on the fused q‖k slab (stats broadcast via MXU matmul)
    mu = jnp.dot(qk, m2, preferred_element_type=jnp.float32)             # E[x] per head
    msq = jnp.dot(qk * qk, m2, preferred_element_type=jnp.float32)       # E[x^2] per head
    var = msq - mu * mu
    qk = (qk - mu) * jax.lax.rsqrt(var + QK_EPS) * qk_w + qk_b

    # fused RoPE: rot(x) = x*cos + (x @ P_signed)*sin, applied to q and k at once
    qk = qk * cos2 + jnp.dot(qk, psgn2, preferred_element_type=jnp.float32) * sin2

    # causal + same-batch additive mask, generated in-kernel (batch folded into rows).
    ri = jax.lax.broadcasted_iota(jnp.int32, (BS, BS), 0)
    ci = jax.lax.broadcasted_iota(jnp.int32, (BS, BS), 1)
    shift = int(math.log2(S))               # S is a power of two in this config
    same_b = (ri >> shift) == (ci >> shift)
    bias = jnp.where(same_b & (ci <= ri), 0.0, NEG_INF).astype(jnp.float32)

    # per-head attention core (H=4): 3 tiny matmuls + 1 softmax per head.
    # The output projection is folded per head (o_h @ wo[h*HD:(h+1)*HD, :]) so no
    # lane concatenate is needed.
    attn = jnp.zeros((BS, D), jnp.float32)
    for hh in range(H):
        qsl = slice(hh * HD, (hh + 1) * HD)
        ksl = slice(D + hh * HD, D + (hh + 1) * HD)
        q_h = qk[:, qsl]                    # (BS, HD)
        k_h = qk[:, ksl]
        v_h = xv[:, qsl]
        s_h = jnp.dot(q_h, k_h.T, preferred_element_type=jnp.float32) * SCALE + bias
        s_h = s_h - jnp.max(s_h, axis=-1, keepdims=True)
        p_h = jnp.exp(s_h)
        p_h = p_h * pl.reciprocal(jnp.sum(p_h, axis=-1, keepdims=True), approx=True)
        o_h = jnp.dot(p_h, v_h, preferred_element_type=jnp.float32)      # (BS, HD)
        attn = attn + jnp.dot(o_h, wo_ref[qsl, :],
                              preferred_element_type=jnp.float32)        # (BS, D)

    x1 = x + attn                                                        # residual 1

    # ---------------- FFN branch (pre-norm, SwiGLU) ----------------
    h2 = _rmsnorm(x1, ln2_w, EPS)
    ag = jnp.dot(h2, w13_ref[...], preferred_element_type=jnp.float32)   # (BS, 2*HIDDEN)
    a = ag[:, 0:HIDDEN]                       # tile-aligned lane slices
    g = ag[:, HIDDEN:2 * HIDDEN]
    ff = jnp.dot(a * jax.nn.sigmoid(a) * g, w2_ref[...],
                 preferred_element_type=jnp.float32)                     # (BS, D)

    out_ref[...] = x1 + ff                                               # residual 2


def block_forward(x, wq, wk, wv, wo, qlnw, qlnb, klnw, klnb,
                  cos_h, sin_h, ln1, ln2, w1, w2, w3):
    b, s, d = x.shape
    assert (b, s, d) == (B, S, D)
    x2 = x.reshape(BS, D)

    # fused projection weights (in, out) layout
    wqk = jnp.concatenate([wq, wk], axis=1)            # (D, 2D)  = (64, 128)
    w13 = jnp.concatenate([w1, w3], axis=1)            # (D, 2*HIDDEN) = (64, 512)

    # pack small vector params into one (8, 2D) slab
    qk_w = jnp.concatenate([jnp.tile(qlnw, H), jnp.tile(klnw, H)])   # (2D,)
    qk_b = jnp.concatenate([jnp.tile(qlnb, H), jnp.tile(klnb, H)])
    pad_d = jnp.zeros((D,), jnp.float32)
    pad_2d = jnp.zeros((2 * D,), jnp.float32)
    normpack = jnp.stack([qk_w, qk_b,
                          jnp.concatenate([ln1, pad_d]),
                          jnp.concatenate([ln2, pad_d]),
                          pad_2d, pad_2d, pad_2d, pad_2d])           # (8, 2D)

    # RoPE tables tiled to the fused (BS, 2D) layout: row r -> position r % S,
    # column c -> head-local index c % HD (same table for q and k halves).
    cos_il = jnp.repeat(cos_h, 2, axis=-1)             # (S, HD) interleaved
    sin_il = jnp.repeat(sin_h, 2, axis=-1)
    cos_full = jnp.tile(cos_il, (B, 2 * H))            # (BS, 2D)
    sin_full = jnp.tile(sin_il, (B, 2 * H))
    cs = jnp.concatenate([cos_full, sin_full], axis=0)  # (2*BS, 2D) = (32, 128)

    # constant matrices: per-head block-mean | signed pair-swap, packed (2D, 4D)
    m2 = np.zeros((2 * D, 2 * D), np.float32)
    for blk in range(2 * H):
        m2[blk * HD:(blk + 1) * HD, blk * HD:(blk + 1) * HD] = 1.0 / HD
    psgn2 = np.zeros((2 * D, 2 * D), np.float32)
    for m in range(D):
        psgn2[2 * m + 1, 2 * m] = -1.0
        psgn2[2 * m, 2 * m + 1] = 1.0
    aux = jnp.asarray(np.concatenate([m2, psgn2], axis=1))   # (128, 256)

    params = (x2, wqk, wv, wo, w13, w2, normpack, cs, aux)
    in_specs = [pl.BlockSpec(p.shape, lambda i: (0, 0)) for p in params]

    out2 = pl.pallas_call(
        block_kernel,
        out_shape=jax.ShapeDtypeStruct((BS, D), x.dtype),
        grid=(1,),
        in_specs=in_specs,
        out_specs=pl.BlockSpec((BS, D), lambda i: (0, 0)),
        compiler_params=pltpu.CompilerParams(
            dimension_semantics=("arbitrary",)),
    )(*params)
    return out2.reshape(b, s, d)


# ------------------- pure-JAX reference (mirrors the torch code) -------------------
def reference(x, wq, wk, wv, wo, qlnw, qlnb, klnw, klnb,
              cos_h, sin_h, mask, ln1, ln2, w1, w2, w3):
    def rms(v, w):
        return v * jax.lax.rsqrt(jnp.mean(v * v, -1, keepdims=True) + EPS) * w

    h = rms(x, ln1)
    xq = (h @ wq).reshape(B, S, H, HD)
    xk = (h @ wk).reshape(B, S, H, HD)
    xv = (h @ wv).reshape(B, S, H, HD)

    def ln(v, w, bb):
        mu = jnp.mean(v, -1, keepdims=True)
        var = jnp.mean((v - mu) ** 2, -1, keepdims=True)
        return (v - mu) * jax.lax.rsqrt(var + QK_EPS) * w + bb

    xq = ln(xq, qlnw, qlnb)
    xk = ln(xk, klnw, klnb)

    def rope(v):
        vr = v.reshape(B, S, H, HD // 2, 2)
        re, im = vr[..., 0], vr[..., 1]
        c = cos_h[None, :, None, :]
        s_ = sin_h[None, :, None, :]
        out = jnp.stack([re * c - im * s_, re * s_ + im * c], axis=-1)
        return out.reshape(B, S, H, HD)

    xq, xk = rope(xq), rope(xk)
    q = xq.transpose(0, 2, 1, 3)
    k = xk.transpose(0, 2, 1, 3)
    v = xv.transpose(0, 2, 1, 3)
    scores = jnp.einsum("bhqd,bhkd->bhqk", q, k) * SCALE + mask[None, None]
    p = jax.nn.softmax(scores, axis=-1)
    o = jnp.einsum("bhqk,bhkd->bhqd", p, v).transpose(0, 2, 1, 3).reshape(B, S, D)
    x1 = x + o @ wo
    h2 = rms(x1, ln2)
    a = h2 @ w1
    g = h2 @ w3
    return x1 + (a * jax.nn.sigmoid(a) * g) @ w2


if __name__ == "__main__":
    key = jax.random.PRNGKey(0)
    ks = jax.random.split(key, 10)

    x = jax.random.normal(ks[0], (B, S, D), jnp.float32)

    # Linear weights, pre-transposed to (in, out); deterministic random init.
    wq = 0.05 * jax.random.normal(ks[1], (D, D), jnp.float32)
    wk = 0.05 * jax.random.normal(ks[2], (D, D), jnp.float32)
    wv = 0.05 * jax.random.normal(ks[3], (D, D), jnp.float32)
    wo = 0.05 * jax.random.normal(ks[4], (D, D), jnp.float32)
    w1 = 0.05 * jax.random.normal(ks[5], (D, HIDDEN), jnp.float32)
    w2 = 0.05 * jax.random.normal(ks[6], (HIDDEN, D), jnp.float32)
    w3 = 0.05 * jax.random.normal(ks[7], (D, HIDDEN), jnp.float32)

    # Norm params (torch defaults: weight=1, bias=0).
    ln1 = jnp.ones((D,), jnp.float32)
    ln2 = jnp.ones((D,), jnp.float32)
    qlnw = jnp.ones((HD,), jnp.float32)
    qlnb = jnp.zeros((HD,), jnp.float32)
    klnw = jnp.ones((HD,), jnp.float32)
    klnb = jnp.zeros((HD,), jnp.float32)

    # RoPE tables (Llama-style precompute_freqs_cis, theta=10000).
    freqs = 1.0 / (ROPE_THETA ** (np.arange(0, HD, 2, dtype=np.float32) / HD))
    ang = np.outer(np.arange(S, dtype=np.float32), freqs)        # (S, HD//2)
    cos_h = jnp.asarray(np.cos(ang))
    sin_h = jnp.asarray(np.sin(ang))

    # Causal additive mask (reference only; kernel builds its own via iota).
    i = np.arange(S)[:, None]
    j = np.arange(S)[None, :]
    mask = jnp.asarray(np.where(j <= i, 0.0, NEG_INF).astype(np.float32))

    out = block_forward(x, wq, wk, wv, wo, qlnw, qlnb, klnw, klnb,
                        cos_h, sin_h, ln1, ln2, w1, w2, w3)
    out = jax.block_until_ready(out)

    ref = reference(x, wq, wk, wv, wo, qlnw, qlnb, klnw, klnb,
                    cos_h, sin_h, mask, ln1, ln2, w1, w2, w3)
    # tolerance loosened slightly vs pure-f32 because of pl.reciprocal(approx=True)
    np.testing.assert_allclose(np.asarray(out), np.asarray(ref), rtol=2e-3, atol=2e-3)

    print("KERNEL_OK")
</pallas_src>

<mosaic_0001>
module attributes {stable_mosaic.version = 11 : i64} {
  func.func @block_kernel(%arg0: i32, %arg1: memref<16x64xf32, #tpu.memory_space<vmem>>, %arg2: memref<64x128xf32, #tpu.memory_space<vmem>>, %arg3: memref<64x64xf32, #tpu.memory_space<vmem>>, %arg4: memref<64x64xf32, #tpu.memory_space<vmem>>, %arg5: memref<64x512xf32, #tpu.memory_space<vmem>>, %arg6: memref<256x64xf32, #tpu.memory_space<vmem>>, %arg7: memref<8x128xf32, #tpu.memory_space<vmem>>, %arg8: memref<32x128xf32, #tpu.memory_space<vmem>>, %arg9: memref<128x256xf32, #tpu.memory_space<vmem>>, %arg10: memref<16x64xf32, #tpu.memory_space<vmem>>) attributes {dimension_semantics = [#tpu.dimension_semantics<arbitrary>], iteration_bounds = array<i64: 1>, scalar_prefetch = 0 : i64, scratch_operands = 0 : i64, tpu.core_type = #tpu.core_type<tc>, window_params = [{pipeline_mode = #tpu.pipeline_mode<synchronous>, transform_indices = @transform_0, window_bounds = array<i64: 16, 64>}, {pipeline_mode = #tpu.pipeline_mode<synchronous>, transform_indices = @transform_1, window_bounds = array<i64: 64, 128>}, {pipeline_mode = #tpu.pipeline_mode<synchronous>, transform_indices = @transform_2, window_bounds = array<i64: 64, 64>}, {pipeline_mode = #tpu.pipeline_mode<synchronous>, transform_indices = @transform_3, window_bounds = array<i64: 64, 64>}, {pipeline_mode = #tpu.pipeline_mode<synchronous>, transform_indices = @transform_4, window_bounds = array<i64: 64, 512>}, {pipeline_mode = #tpu.pipeline_mode<synchronous>, transform_indices = @transform_5, window_bounds = array<i64: 256, 64>}, {pipeline_mode = #tpu.pipeline_mode<synchronous>, transform_indices = @transform_6, window_bounds = array<i64: 8, 128>}, {pipeline_mode = #tpu.pipeline_mode<synchronous>, transform_indices = @transform_7, window_bounds = array<i64: 32, 128>}, {pipeline_mode = #tpu.pipeline_mode<synchronous>, transform_indices = @transform_8, window_bounds = array<i64: 128, 256>}, {pipeline_mode = #tpu.pipeline_mode<synchronous>, transform_indices = @transform_9, window_bounds = array<i64: 16, 64>}]} {
    %c0 = arith.constant 0 : index
    %c0_0 = arith.constant 0 : index
    %0 = vector.load %arg1[%c0, %c0_0] : memref<16x64xf32, #tpu.memory_space<vmem>>, vector<16x64xf32>
    %c0_1 = arith.constant 0 : index
    %c0_2 = arith.constant 0 : index
    %1 = vector.load %arg7[%c0_1, %c0_2] : memref<8x128xf32, #tpu.memory_space<vmem>>, vector<8x128xf32>
    %2 = vector.extract_strided_slice %1 {offsets = [0, 0], sizes = [1, 128], strides = [1, 1]} : vector<8x128xf32> to vector<1x128xf32>
    %3 = vector.extract_strided_slice %1 {offsets = [1, 0], sizes = [1, 128], strides = [1, 1]} : vector<8x128xf32> to vector<1x128xf32>
    %4 = vector.extract_strided_slice %1 {offsets = [2, 0], sizes = [1, 64], strides = [1, 1]} : vector<8x128xf32> to vector<1x64xf32>
    %5 = vector.extract_strided_slice %1 {offsets = [3, 0], sizes = [1, 64], strides = [1, 1]} : vector<8x128xf32> to vector<1x64xf32>
    %c0_3 = arith.constant 0 : index
    %c0_4 = arith.constant 0 : index
    %6 = vector.load %arg8[%c0_3, %c0_4] : memref<32x128xf32, #tpu.memory_space<vmem>>, vector<16x128xf32>
    %c16 = arith.constant 16 : index
    %c0_5 = arith.constant 0 : index
    %7 = vector.load %arg8[%c16, %c0_5] : memref<32x128xf32, #tpu.memory_space<vmem>>, vector<16x128xf32>
    %c0_6 = arith.constant 0 : index
    %c0_7 = arith.constant 0 : index
    %8 = vector.load %arg9[%c0_6, %c0_7] : memref<128x256xf32, #tpu.memory_space<vmem>>, vector<128x128xf32>
    %c0_8 = arith.constant 0 : index
    %c128 = arith.constant 128 : index
    %9 = vector.load %arg9[%c0_8, %c128] : memref<128x256xf32, #tpu.memory_space<vmem>>, vector<128x128xf32>
    %10 = arith.mulf %0, %0 : vector<16x64xf32>
    %cst = arith.constant dense<0.000000e+00> : vector<16xf32>
    %11 = vector.multi_reduction <add>, %10, %cst [1] : vector<16x64xf32> to vector<16xf32>
    %12 = vector.shape_cast %11 : vector<16xf32> to vector<16x1xf32>
    %cst_9 = arith.constant 6.400000e+01 : f32
    %13 = vector.broadcast %cst_9 : f32 to vector<16x1xf32>
    %14 = arith.divf %12, %13 : vector<16x1xf32>
    %cst_10 = arith.constant 9.99999974E-6 : f32
    %15 = vector.broadcast %cst_10 : f32 to vector<16x1xf32>
    %16 = arith.addf %14, %15 : vector<16x1xf32>
    %17 = math.rsqrt %16 : vector<16x1xf32>
    %18 = vector.broadcast %17 : vector<16x1xf32> to vector<16x64xf32>
    %19 = arith.mulf %0, %18 : vector<16x64xf32>
    %20 = vector.broadcast %4 : vector<1x64xf32> to vector<16x64xf32>
    %21 = arith.mulf %19, %20 : vector<16x64xf32>
    %c0_11 = arith.constant 0 : index
    %c0_12 = arith.constant 0 : index
    %22 = vector.load %arg2[%c0_11, %c0_12] : memref<64x128xf32, #tpu.memory_space<vmem>>, vector<64x128xf32>
    %cst_13 = arith.constant dense<0.000000e+00> : vector<16x128xf32>
    %23 = tpu.matmul %21, %22, %cst_13 {dimension_numbers = #tpu.dot_dimension_numbers<[1], [0], [0], [1], [0, 0, 1, 1], [], []>} : vector<16x64xf32>, vector<64x128xf32>, vector<16x128xf32> -> vector<16x128xf32>
    %c0_14 = arith.constant 0 : index
    %c0_15 = arith.constant 0 : index
    %24 = vector.load %arg3[%c0_14, %c0_15] : memref<64x64xf32, #tpu.memory_space<vmem>>, vector<64x64xf32>
    %cst_16 = arith.constant dense<0.000000e+00> : vector<16x64xf32>
    %25 = tpu.matmul %21, %24, %cst_16 {dimension_numbers = #tpu.dot_dimension_numbers<[1], [0], [0], [1], [0, 0, 1, 1], [], []>} : vector<16x64xf32>, vector<64x64xf32>, vector<16x64xf32> -> vector<16x64xf32>
    %cst_17 = arith.constant dense<0.000000e+00> : vector<16x128xf32>
    %26 = tpu.matmul %23, %8, %cst_17 {dimension_numbers = #tpu.dot_dimension_numbers<[1], [0], [0], [1], [0, 0, 1, 1], [], []>} : vector<16x128xf32>, vector<128x128xf32>, vector<16x128xf32> -> vector<16x128xf32>
    %27 = arith.mulf %23, %23 : vector<16x128xf32>
    %cst_18 = arith.constant dense<0.000000e+00> : vector<16x128xf32>
    %28 = tpu.matmul %27, %8, %cst_18 {dimension_numbers = #tpu.dot_dimension_numbers<[1], [0], [0], [1], [0, 0, 1, 1], [], []>} : vector<16x128xf32>, vector<128x128xf32>, vector<16x128xf32> -> vector<16x128xf32>
    %29 = arith.mulf %26, %26 : vector<16x128xf32>
    %30 = arith.subf %28, %29 : vector<16x128xf32>
    %31 = arith.subf %23, %26 : vector<16x128xf32>
    %cst_19 = arith.constant 9.99999974E-6 : f32
    %32 = vector.broadcast %cst_19 : f32 to vector<16x128xf32>
    %33 = arith.addf %30, %32 : vector<16x128xf32>
    %34 = math.rsqrt %33 : vector<16x128xf32>
    %35 = arith.mulf %31, %34 : vector<16x128xf32>
    %36 = vector.broadcast %2 : vector<1x128xf32> to vector<16x128xf32>
    %37 = arith.mulf %35, %36 : vector<16x128xf32>
    %38 = vector.broadcast %3 : vector<1x128xf32> to vector<16x128xf32>
    %39 = arith.addf %37, %38 : vector<16x128xf32>
    %40 = arith.mulf %39, %6 : vector<16x128xf32>
    %cst_20 = arith.constant dense<0.000000e+00> : vector<16x128xf32>
    %41 = tpu.matmul %39, %9, %cst_20 {dimension_numbers = #tpu.dot_dimension_numbers<[1], [0], [0], [1], [0, 0, 1, 1], [], []>} : vector<16x128xf32>, vector<128x128xf32>, vector<16x128xf32> -> vector<16x128xf32>
    %42 = arith.mulf %41, %7 : vector<16x128xf32>
    %43 = arith.addf %40, %42 : vector<16x128xf32>
    %44 = tpu.iota {dimensions = array<i32: 0>} : vector<16x16xi32>
    %45 = tpu.iota {dimensions = array<i32: 1>} : vector<16x16xi32>
    %c3_i32 = arith.constant 3 : i32
    %46 = vector.broadcast %c3_i32 : i32 to vector<16x16xi32>
    %47 = arith.shrsi %44, %46 : vector<16x16xi32>
    %c3_i32_21 = arith.constant 3 : i32
    %48 = vector.broadcast %c3_i32_21 : i32 to vector<16x16xi32>
    %49 = arith.shrsi %45, %48 : vector<16x16xi32>
    %50 = arith.cmpi eq, %47, %49 : vector<16x16xi32>
    %51 = arith.cmpi sle, %45, %44 : vector<16x16xi32>
    %52 = arith.andi %50, %51 : vector<16x16xi1>
    %cst_22 = arith.constant 0.000000e+00 : f32
    %cst_23 = arith.constant -1.000000e+09 : f32
    %53 = vector.broadcast %cst_22 : f32 to vector<16x16xf32>
    %54 = vector.broadcast %cst_23 : f32 to vector<16x16xf32>
    %55 = arith.select %52, %53, %54 : vector<16x16xi1>, vector<16x16xf32>
    %cst_24 = arith.constant 0.000000e+00 : f32
    %56 = vector.broadcast %cst_24 : f32 to vector<16x64xf32>
    %57 = vector.extract_strided_slice %43 {offsets = [0, 0], sizes = [16, 16], strides = [1, 1]} : vector<16x128xf32> to vector<16x16xf32>
    %58 = vector.extract_strided_slice %43 {offsets = [0, 64], sizes = [16, 16], strides = [1, 1]} : vector<16x128xf32> to vector<16x16xf32>
    %59 = vector.extract_strided_slice %25 {offsets = [0, 0], sizes = [16, 16], strides = [1, 1]} : vector<16x64xf32> to vector<16x16xf32>
    %60 = tpu.transpose %58, [1, 0] : vector<16x16xf32> -> vector<16x16xf32>
    %cst_25 = arith.constant dense<0.000000e+00> : vector<16x16xf32>
    %61 = tpu.matmul %57, %60, %cst_25 {dimension_numbers = #tpu.dot_dimension_numbers<[1], [0], [0], [1], [0, 0, 1, 1], [], []>} : vector<16x16xf32>, vector<16x16xf32>, vector<16x16xf32> -> vector<16x16xf32>
    %cst_26 = arith.constant 2.500000e-01 : f32
    %62 = vector.broadcast %cst_26 : f32 to vector<16x16xf32>
    %63 = arith.mulf %61, %62 : vector<16x16xf32>
    %64 = arith.addf %63, %55 : vector<16x16xf32>
    %cst_27 = arith.constant dense<0xFF800000> : vector<16xf32>
    %65 = vector.multi_reduction <maximumf>, %64, %cst_27 [1] : vector<16x16xf32> to vector<16xf32>
    %66 = vector.shape_cast %65 : vector<16xf32> to vector<16x1xf32>
    %67 = vector.broadcast %66 : vector<16x1xf32> to vector<16x16xf32>
    %68 = arith.subf %64, %67 : vector<16x16xf32>
    %69 = math.exp %68 : vector<16x16xf32>
    %cst_28 = arith.constant dense<0.000000e+00> : vector<16xf32>
    %70 = vector.multi_reduction <add>, %69, %cst_28 [1] : vector<16x16xf32> to vector<16xf32>
    %71 = vector.shape_cast %70 : vector<16xf32> to vector<16x1xf32>
    %72 = tpu.reciprocal %71 {approx = true} : vector<16x1xf32> -> vector<16x1xf32>
    %73 = vector.broadcast %72 : vector<16x1xf32> to vector<16x16xf32>
    %74 = arith.mulf %69, %73 : vector<16x16xf32>
    %cst_29 = arith.constant dense<0.000000e+00> : vector<16x16xf32>
    %75 = tpu.matmul %74, %59, %cst_29 {dimension_numbers = #tpu.dot_dimension_numbers<[1], [0], [0], [1], [0, 0, 1, 1], [], []>} : vector<16x16xf32>, vector<16x16xf32>, vector<16x16xf32> -> vector<16x16xf32>
    %c0_30 = arith.constant 0 : index
    %c0_31 = arith.constant 0 : index
    %76 = vector.load %arg4[%c0_30, %c0_31] : memref<64x64xf32, #tpu.memory_space<vmem>>, vector<16x64xf32>
    %cst_32 = arith.constant dense<0.000000e+00> : vector<16x64xf32>
    %77 = tpu.matmul %75, %76, %cst_32 {dimension_numbers = #tpu.dot_dimension_numbers<[1], [0], [0], [1], [0, 0, 1, 1], [], []>} : vector<16x16xf32>, vector<16x64xf32>, vector<16x64xf32> -> vector<16x64xf32>
    %78 = arith.addf %56, %77 : vector<16x64xf32>
    %79 = vector.extract_strided_slice %43 {offsets = [0, 16], sizes = [16, 16], strides = [1, 1]} : vector<16x128xf32> to vector<16x16xf32>
    %80 = vector.extract_strided_slice %43 {offsets = [0, 80], sizes = [16, 16], strides = [1, 1]} : vector<16x128xf32> to vector<16x16xf32>
    %81 = vector.extract_strided_slice %25 {offsets = [0, 16], sizes = [16, 16], strides = [1, 1]} : vector<16x64xf32> to vector<16x16xf32>
    %82 = tpu.transpose %80, [1, 0] : vector<16x16xf32> -> vector<16x16xf32>
    %cst_33 = arith.constant dense<0.000000e+00> : vector<16x16xf32>
    %83 = tpu.matmul %79, %82, %cst_33 {dimension_numbers = #tpu.dot_dimension_numbers<[1], [0], [0], [1], [0, 0, 1, 1], [], []>} : vector<16x16xf32>, vector<16x16xf32>, vector<16x16xf32> -> vector<16x16xf32>
    %cst_34 = arith.constant 2.500000e-01 : f32
    %84 = vector.broadcast %cst_34 : f32 to vector<16x16xf32>
    %85 = arith.mulf %83, %84 : vector<16x16xf32>
    %86 = arith.addf %85, %55 : vector<16x16xf32>
    %cst_35 = arith.constant dense<0xFF800000> : vector<16xf32>
    %87 = vector.multi_reduction <maximumf>, %86, %cst_35 [1] : vector<16x16xf32> to vector<16xf32>
    %88 = vector.shape_cast %87 : vector<16xf32> to vector<16x1xf32>
    %89 = vector.broadcast %88 : vector<16x1xf32> to vector<16x16xf32>
    %90 = arith.subf %86, %89 : vector<16x16xf32>
    %91 = math.exp %90 : vector<16x16xf32>
    %cst_36 = arith.constant dense<0.000000e+00> : vector<16xf32>
    %92 = vector.multi_reduction <add>, %91, %cst_36 [1] : vector<16x16xf32> to vector<16xf32>
    %93 = vector.shape_cast %92 : vector<16xf32> to vector<16x1xf32>
    %94 = tpu.reciprocal %93 {approx = true} : vector<16x1xf32> -> vector<16x1xf32>
    %95 = vector.broadcast %94 : vector<16x1xf32> to vector<16x16xf32>
    %96 = arith.mulf %91, %95 : vector<16x16xf32>
    %cst_37 = arith.constant dense<0.000000e+00> : vector<16x16xf32>
    %97 = tpu.matmul %96, %81, %cst_37 {dimension_numbers = #tpu.dot_dimension_numbers<[1], [0], [0], [1], [0, 0, 1, 1], [], []>} : vector<16x16xf32>, vector<16x16xf32>, vector<16x16xf32> -> vector<16x16xf32>
    %c16_38 = arith.constant 16 : index
    %c0_39 = arith.constant 0 : index
    %98 = vector.load %arg4[%c16_38, %c0_39] : memref<64x64xf32, #tpu.memory_space<vmem>>, vector<16x64xf32>
    %cst_40 = arith.constant dense<0.000000e+00> : vector<16x64xf32>
    %99 = tpu.matmul %97, %98, %cst_40 {dimension_numbers = #tpu.dot_dimension_numbers<[1], [0], [0], [1], [0, 0, 1, 1], [], []>} : vector<16x16xf32>, vector<16x64xf32>, vector<16x64xf32> -> vector<16x64xf32>
    %100 = arith.addf %78, %99 : vector<16x64xf32>
    %101 = vector.extract_strided_slice %43 {offsets = [0, 32], sizes = [16, 16], strides = [1, 1]} : vector<16x128xf32> to vector<16x16xf32>
    %102 = vector.extract_strided_slice %43 {offsets = [0, 96], sizes = [16, 16], strides = [1, 1]} : vector<16x128xf32> to vector<16x16xf32>
    %103 = vector.extract_strided_slice %25 {offsets = [0, 32], sizes = [16, 16], strides = [1, 1]} : vector<16x64xf32> to vector<16x16xf32>
    %104 = tpu.transpose %102, [1, 0] : vector<16x16xf32> -> vector<16x16xf32>
    %cst_41 = arith.constant dense<0.000000e+00> : vector<16x16xf32>
    %105 = tpu.matmul %101, %104, %cst_41 {dimension_numbers = #tpu.dot_dimension_numbers<[1], [0], [0], [1], [0, 0, 1, 1], [], []>} : vector<16x16xf32>, vector<16x16xf32>, vector<16x16xf32> -> vector<16x16xf32>
    %cst_42 = arith.constant 2.500000e-01 : f32
    %106 = vector.broadcast %cst_42 : f32 to vector<16x16xf32>
    %107 = arith.mulf %105, %106 : vector<16x16xf32>
    %108 = arith.addf %107, %55 : vector<16x16xf32>
    %cst_43 = arith.constant dense<0xFF800000> : vector<16xf32>
    %109 = vector.multi_reduction <maximumf>, %108, %cst_43 [1] : vector<16x16xf32> to vector<16xf32>
    %110 = vector.shape_cast %109 : vector<16xf32> to vector<16x1xf32>
    %111 = vector.broadcast %110 : vector<16x1xf32> to vector<16x16xf32>
    %112 = arith.subf %108, %111 : vector<16x16xf32>
    %113 = math.exp %112 : vector<16x16xf32>
    %cst_44 = arith.constant dense<0.000000e+00> : vector<16xf32>
    %114 = vector.multi_reduction <add>, %113, %cst_44 [1] : vector<16x16xf32> to vector<16xf32>
    %115 = vector.shape_cast %114 : vector<16xf32> to vector<16x1xf32>
    %116 = tpu.reciprocal %115 {approx = true} : vector<16x1xf32> -> vector<16x1xf32>
    %117 = vector.broadcast %116 : vector<16x1xf32> to vector<16x16xf32>
    %118 = arith.mulf %113, %117 : vector<16x16xf32>
    %cst_45 = arith.constant dense<0.000000e+00> : vector<16x16xf32>
    %119 = tpu.matmul %118, %103, %cst_45 {dimension_numbers = #tpu.dot_dimension_numbers<[1], [0], [0], [1], [0, 0, 1, 1], [], []>} : vector<16x16xf32>, vector<16x16xf32>, vector<16x16xf32> -> vector<16x16xf32>
    %c32 = arith.constant 32 : index
    %c0_46 = arith.constant 0 : index
    %120 = vector.load %arg4[%c32, %c0_46] : memref<64x64xf32, #tpu.memory_space<vmem>>, vector<16x64xf32>
    %cst_47 = arith.constant dense<0.000000e+00> : vector<16x64xf32>
    %121 = tpu.matmul %119, %120, %cst_47 {dimension_numbers = #tpu.dot_dimension_numbers<[1], [0], [0], [1], [0, 0, 1, 1], [], []>} : vector<16x16xf32>, vector<16x64xf32>, vector<16x64xf32> -> vector<16x64xf32>
    %122 = arith.addf %100, %121 : vector<16x64xf32>
    %123 = vector.extract_strided_slice %43 {offsets = [0, 48], sizes = [16, 16], strides = [1, 1]} : vector<16x128xf32> to vector<16x16xf32>
    %124 = vector.extract_strided_slice %43 {offsets = [0, 112], sizes = [16, 16], strides = [1, 1]} : vector<16x128xf32> to vector<16x16xf32>
    %125 = vector.extract_strided_slice %25 {offsets = [0, 48], sizes = [16, 16], strides = [1, 1]} : vector<16x64xf32> to vector<16x16xf32>
    %126 = tpu.transpose %124, [1, 0] : vector<16x16xf32> -> vector<16x16xf32>
    %cst_48 = arith.constant dense<0.000000e+00> : vector<16x16xf32>
    %127 = tpu.matmul %123, %126, %cst_48 {dimension_numbers = #tpu.dot_dimension_numbers<[1], [0], [0], [1], [0, 0, 1, 1], [], []>} : vector<16x16xf32>, vector<16x16xf32>, vector<16x16xf32> -> vector<16x16xf32>
    %cst_49 = arith.constant 2.500000e-01 : f32
    %128 = vector.broadcast %cst_49 : f32 to vector<16x16xf32>
    %129 = arith.mulf %127, %128 : vector<16x16xf32>
    %130 = arith.addf %129, %55 : vector<16x16xf32>
    %cst_50 = arith.constant dense<0xFF800000> : vector<16xf32>
    %131 = vector.multi_reduction <maximumf>, %130, %cst_50 [1] : vector<16x16xf32> to vector<16xf32>
    %132 = vector.shape_cast %131 : vector<16xf32> to vector<16x1xf32>
    %133 = vector.broadcast %132 : vector<16x1xf32> to vector<16x16xf32>
    %134 = arith.subf %130, %133 : vector<16x16xf32>
    %135 = math.exp %134 : vector<16x16xf32>
    %cst_51 = arith.constant dense<0.000000e+00> : vector<16xf32>
    %136 = vector.multi_reduction <add>, %135, %cst_51 [1] : vector<16x16xf32> to vector<16xf32>
    %137 = vector.shape_cast %136 : vector<16xf32> to vector<16x1xf32>
    %138 = tpu.reciprocal %137 {approx = true} : vector<16x1xf32> -> vector<16x1xf32>
    %139 = vector.broadcast %138 : vector<16x1xf32> to vector<16x16xf32>
    %140 = arith.mulf %135, %139 : vector<16x16xf32>
    %cst_52 = arith.constant dense<0.000000e+00> : vector<16x16xf32>
    %141 = tpu.matmul %140, %125, %cst_52 {dimension_numbers = #tpu.dot_dimension_numbers<[1], [0], [0], [1], [0, 0, 1, 1], [], []>} : vector<16x16xf32>, vector<16x16xf32>, vector<16x16xf32> -> vector<16x16xf32>
    %c48 = arith.constant 48 : index
    %c0_53 = arith.constant 0 : index
    %142 = vector.load %arg4[%c48, %c0_53] : memref<64x64xf32, #tpu.memory_space<vmem>>, vector<16x64xf32>
    %cst_54 = arith.constant dense<0.000000e+00> : vector<16x64xf32>
    %143 = tpu.matmul %141, %142, %cst_54 {dimension_numbers = #tpu.dot_dimension_numbers<[1], [0], [0], [1], [0, 0, 1, 1], [], []>} : vector<16x16xf32>, vector<16x64xf32>, vector<16x64xf32> -> vector<16x64xf32>
    %144 = arith.addf %122, %143 : vector<16x64xf32>
    %145 = arith.addf %0, %144 : vector<16x64xf32>
    %146 = arith.mulf %145, %145 : vector<16x64xf32>
    %cst_55 = arith.constant dense<0.000000e+00> : vector<16xf32>
    %147 = vector.multi_reduction <add>, %146, %cst_55 [1] : vector<16x64xf32> to vector<16xf32>
    %148 = vector.shape_cast %147 : vector<16xf32> to vector<16x1xf32>
    %cst_56 = arith.constant 6.400000e+01 : f32
    %149 = vector.broadcast %cst_56 : f32 to vector<16x1xf32>
    %150 = arith.divf %148, %149 : vector<16x1xf32>
    %cst_57 = arith.constant 9.99999974E-6 : f32
    %151 = vector.broadcast %cst_57 : f32 to vector<16x1xf32>
    %152 = arith.addf %150, %151 : vector<16x1xf32>
    %153 = math.rsqrt %152 : vector<16x1xf32>
    %154 = vector.broadcast %153 : vector<16x1xf32> to vector<16x64xf32>
    %155 = arith.mulf %145, %154 : vector<16x64xf32>
    %156 = vector.broadcast %5 : vector<1x64xf32> to vector<16x64xf32>
    %157 = arith.mulf %155, %156 : vector<16x64xf32>
    %c0_58 = arith.constant 0 : index
    %c0_59 = arith.constant 0 : index
    %158 = vector.load %arg5[%c0_58, %c0_59] : memref<64x512xf32, #tpu.memory_space<vmem>>, vector<64x512xf32>
    %cst_60 = arith.constant dense<0.000000e+00> : vector<16x512xf32>
    %159 = tpu.matmul %157, %158, %cst_60 {dimension_numbers = #tpu.dot_dimension_numbers<[1], [0], [0], [1], [0, 0, 1, 1], [], []>} : vector<16x64xf32>, vector<64x512xf32>, vector<16x512xf32> -> vector<16x512xf32>
    %160 = vector.extract_strided_slice %159 {offsets = [0, 0], sizes = [16, 256], strides = [1, 1]} : vector<16x512xf32> to vector<16x256xf32>
    %161 = vector.extract_strided_slice %159 {offsets = [0, 256], sizes = [16, 256], strides = [1, 1]} : vector<16x512xf32> to vector<16x256xf32>
    %162 = arith.negf %160 : vector<16x256xf32>
    %163 = math.exp %162 : vector<16x256xf32>
    %cst_61 = arith.constant 1.000000e+00 : f32
    %164 = vector.broadcast %cst_61 : f32 to vector<16x256xf32>
    %165 = arith.addf %164, %163 : vector<16x256xf32>
    %166 = arith.divf %164, %165 : vector<16x256xf32>
    %167 = arith.mulf %160, %166 : vector<16x256xf32>
    %168 = arith.mulf %167, %161 : vector<16x256xf32>
    %c0_62 = arith.constant 0 : index
    %c0_63 = arith.constant 0 : index
    %169 = vector.load %arg6[%c0_62, %c0_63] : memref<256x64xf32, #tpu.memory_space<vmem>>, vector<256x64xf32>
    %cst_64 = arith.constant dense<0.000000e+00> : vector<16x64xf32>
    %170 = tpu.matmul %168, %169, %cst_64 {dimension_numbers = #tpu.dot_dimension_numbers<[1], [0], [0], [1], [0, 0, 1, 1], [], []>} : vector<16x256xf32>, vector<256x64xf32>, vector<16x64xf32> -> vector<16x64xf32>
    %171 = arith.addf %145, %170 : vector<16x64xf32>
    %c0_65 = arith.constant 0 : index
    %c0_66 = arith.constant 0 : index
    %172 = vector.load %arg10[%c0_65, %c0_66] : memref<16x64xf32, #tpu.memory_space<vmem>>, vector<16x64xf32>
    tpu.vector_store %arg10[%c0_65, %c0_66], %171 {strides = array<i32>} : memref<16x64xf32, #tpu.memory_space<vmem>>, vector<16x64xf32>,
    return
  }
  func.func @transform_0(%arg0: i32) -> (i32, i32) {
    %c0_i32 = arith.constant 0 : i32
    %c0_i32_0 = arith.constant 0 : i32
    %c0_i32_1 = arith.constant 0 : i32
    return %c0_i32, %c0_i32_0 : i32, i32
  }
  func.func @transform_1(%arg0: i32) -> (i32, i32) {
    %c0_i32 = arith.constant 0 : i32
    %c0_i32_0 = arith.constant 0 : i32
    %c0_i32_1 = arith.constant 0 : i32
    return %c0_i32, %c0_i32_0 : i32, i32
  }
  func.func @transform_2(%arg0: i32) -> (i32, i32) {
    %c0_i32 = arith.constant 0 : i32
    %c0_i32_0 = arith.constant 0 : i32
    %c0_i32_1 = arith.constant 0 : i32
    return %c0_i32, %c0_i32_0 : i32, i32
  }
  func.func @transform_3(%arg0: i32) -> (i32, i32) {
    %c0_i32 = arith.constant 0 : i32
    %c0_i32_0 = arith.constant 0 : i32
    %c0_i32_1 = arith.constant 0 : i32
    return %c0_i32, %c0_i32_0 : i32, i32
  }
  func.func @transform_4(%arg0: i32) -> (i32, i32) {
    %c0_i32 = arith.constant 0 : i32
    %c0_i32_0 = arith.constant 0 : i32
    %c0_i32_1 = arith.constant 0 : i32
    return %c0_i32, %c0_i32_0 : i32, i32
  }
  func.func @transform_5(%arg0: i32) -> (i32, i32) {
    %c0_i32 = arith.constant 0 : i32
    %c0_i32_0 = arith.constant 0 : i32
    %c0_i32_1 = arith.constant 0 : i32
    return %c0_i32, %c0_i32_0 : i32, i32
  }
  func.func @transform_6(%arg0: i32) -> (i32, i32) {
    %c0_i32 = arith.constant 0 : i32
    %c0_i32_0 = arith.constant 0 : i32
    %c0_i32_1 = arith.constant 0 : i32
    return %c0_i32, %c0_i32_0 : i32, i32
  }
  func.func @transform_7(%arg0: i32) -> (i32, i32) {
    %c0_i32 = arith.constant 0 : i32
    %c0_i32_0 = arith.constant 0 : i32
    %c0_i32_1 = arith.constant 0 : i32
    return %c0_i32, %c0_i32_0 : i32, i32
  }
  func.func @transform_8(%arg0: i32) -> (i32, i32) {
    %c0_i32 = arith.constant 0 : i32
    %c0_i32_0 = arith.constant 0 : i32
    %c0_i32_1 = arith.constant 0 : i32
    return %c0_i32, %c0_i32_0 : i32, i32
  }
  func.func @transform_9(%arg0: i32) -> (i32, i32) {
    %c0_i32 = arith.constant 0 : i32
    %c0_i32_0 = arith.constant 0 : i32
    %c0_i32_1 = arith.constant 0 : i32
    return %c0_i32, %c0_i32_0 : i32, i32
  }
}

</mosaic_0001>

<llo_original>
// kernel: tpu_custom_call.1
$region0: #{tpu_custom_call.1}
  #allocation0 [shape = 'u32[]', space=smem, size = 0x4, offset = 0x4, fixed_abs, tag = 'smem constant byte address 0x4 - core index']
  #allocation1 [shape = 'u32[144,128]{1,0:T(1,128)}', space=vmem, size = 0x12000, scoped, tag = 'internal scratch']
  %s0 = inlined_call_operand.hbm [shape: f32[16,64], index: 0, kind: input, shape index: {}]
  %s1 = inlined_call_operand.vmem [shape: f32[64,128], index: 1, kind: input, shape index: {}]
  %s2 = inlined_call_operand.vmem [shape: f32[64,64], index: 2, kind: input, shape index: {}]
  %s3 = inlined_call_operand.hbm [shape: f32[64,64], index: 3, kind: input, shape index: {}]
  %s4 = inlined_call_operand.vmem [shape: f32[64,512], index: 4, kind: input, shape index: {}]
  %s5 = inlined_call_operand.vmem [shape: f32[256,64], index: 5, kind: input, shape index: {}]
  %s6 = inlined_call_operand.vmem [shape: f32[8,128], index: 6, kind: input, shape index: {}]
  %s7 = inlined_call_operand.hbm [shape: f32[32,128], index: 7, kind: input, shape index: {}]
  %s8 = inlined_call_operand.hbm [shape: f32[128,256], index: 8, kind: input, shape index: {}]
  %s9 = inlined_call_operand.hbm [shape: f32[16,64], index: 9, kind: output, shape index: {}]
  %s10 = sld [smem:[#allocation0]]
  $region62: #{tpu_custom_call.1} parent=0
    _
  %s12 = ssub.s32 1, %s10
  %s13 = scalar_select 0, %s12, %s10
  $region1: #{tpu_custom_call.1} parent=0
    #allocation2 [shape = 'u8[8192]{0}', space=vmem, size = 0x2000, scoped, tag = 'input window, operand 0, single buffered']
    #allocation3 [shape = 's32[1]{0}', space=sflag, size = 0x4, scoped, tag = 'scoped memory for tpu_custom_call.1']
    #allocation4 [shape = 's32[1]{0}', space=sflag, size = 0x4, scoped, tag = 'scoped memory for tpu_custom_call.1']
    #allocation5 [shape = 'u8[32768]{0}', space=vmem, size = 0x8000, scoped, tag = 'input window, operand 3, single buffered']
    #allocation6 [shape = 's32[1]{0}', space=sflag, size = 0x4, scoped, tag = 'scoped memory for tpu_custom_call.1']
    #allocation7 [shape = 'u8[16384]{0}', space=vmem, size = 0x4000, scoped, tag = 'input window, operand 7, single buffered']
    #allocation8 [shape = 'u8[131072]{0}', space=vmem, size = 0x20000, scoped, tag = 'input window, operand 8, single buffered']
    #allocation9 [shape = 's32[1]{0}', space=sflag, size = 0x4, scoped, tag = 'scoped memory for tpu_custom_call.1']
    #allocation10 [shape = 'u8[8192]{0}', space=vmem, size = 0x2000, scoped, tag = 'output window, operand 0, single buffered']
    %14 = vsyncpa [#allocation3], 0
    %15 = vsyncpa [#allocation6], 0
    %16 = vsyncpa [#allocation9], 0
    %17 = vsyncpa [#allocation4], 0
    // Predicated region
    $region2: #{tpu_custom_call.1} parent=1 // pred_check
      _
    $region3: #{tpu_custom_call.1} parent=1 // pred_check_branch
      %19 = sbr.rel (0) target = $region5
    $region4: #{tpu_custom_call.1} parent=1 // pred_region
      %s21 = ssub.s32 256, 256
      %22 = vsyncadd [#allocation3], %s21
      %s23 = sshll.u32 [#allocation2], 4
      %s24 = int_to_ptr.vmem [resolvable:$true] %s23
      %29 = dma.hbm_to_vmem [thread:$0]  %s0, 256, %s24, [#allocation3], 128, 128, 8
    $region5: #{tpu_custom_call.1} parent=1 // pred_fallthru
      _
    // Predicated region
    $region6: #{tpu_custom_call.1} parent=1 // pred_check
      _
    $region7: #{tpu_custom_call.1} parent=1 // pred_check_branch
      %31 = sbr.rel (0) target = $region9
    $region8: #{tpu_custom_call.1} parent=1 // pred_region
      _
    $region9: #{tpu_custom_call.1} parent=1 // pred_fallthru
      _
    // Predicated region
    $region10: #{tpu_custom_call.1} parent=1 // pred_check
      _
    $region11: #{tpu_custom_call.1} parent=1 // pred_check_branch
      %33 = sbr.rel (0) target = $region13
    $region12: #{tpu_custom_call.1} parent=1 // pred_region
      _
    $region13: #{tpu_custom_call.1} parent=1 // pred_fallthru
      _
    // Predicated region
    $region14: #{tpu_custom_call.1} parent=1 // pred_check
      _
    $region15: #{tpu_custom_call.1} parent=1 // pred_check_branch
      %35 = sbr.rel (0) target = $region17
    $region16: #{tpu_custom_call.1} parent=1 // pred_region
      %s37 = ssub.s32 1024, 1024
      %38 = vsyncadd [#allocation6], %s37
      %s39 = sshll.u32 [#allocation5], 4
      %s40 = int_to_ptr.vmem [resolvable:$true] %s39
      %45 = dma.hbm_to_vmem [thread:$0]  %s3, 1024, %s40, [#allocation6], 128, 128, 8
    $region17: #{tpu_custom_call.1} parent=1 // pred_fallthru
      _
    // Predicated region
    $region18: #{tpu_custom_call.1} parent=1 // pred_check
      _
    $region19: #{tpu_custom_call.1} parent=1 // pred_check_branch
      %47 = sbr.rel (0) target = $region21
    $region20: #{tpu_custom_call.1} parent=1 // pred_region
      _
    $region21: #{tpu_custom_call.1} parent=1 // pred_fallthru
      _
    // Predicated region
    $region22: #{tpu_custom_call.1} parent=1 // pred_check
      _
    $region23: #{tpu_custom_call.1} parent=1 // pred_check_branch
      %49 = sbr.rel (0) target = $region25
    $region24: #{tpu_custom_call.1} parent=1 // pred_region
      _
    $region25: #{tpu_custom_call.1} parent=1 // pred_fallthru
      _
    // Predicated region
    $region26: #{tpu_custom_call.1} parent=1 // pred_check
      _
    $region27: #{tpu_custom_call.1} parent=1 // pred_check_branch
      %51 = sbr.rel (0) target = $region29
    $region28: #{tpu_custom_call.1} parent=1 // pred_region
      _
    $region29: #{tpu_custom_call.1} parent=1 // pred_fallthru
      _
    // Predicated region
    $region30: #{tpu_custom_call.1} parent=1 // pred_check
      _
    $region31: #{tpu_custom_call.1} parent=1 // pred_check_branch
      %53 = sbr.rel (0) target = $region33
    $region32: #{tpu_custom_call.1} parent=1 // pred_region
      %s55 = ssub.s32 512, 512
      %56 = vsyncadd [#allocation6], %s55
      %s57 = sshll.u32 [#allocation7], 4
      %s58 = int_to_ptr.vmem [resolvable:$true] %s57
      %63 = dma.hbm_to_vmem [thread:$0]  %s7, 512, %s58, [#allocation6], 128, 128, 8
    $region33: #{tpu_custom_call.1} parent=1 // pred_fallthru
      _
    // Predicated region
    $region34: #{tpu_custom_call.1} parent=1 // pred_check
      _
    $region35: #{tpu_custom_call.1} parent=1 // pred_check_branch
      %65 = sbr.rel (0) target = $region37
    $region36: #{tpu_custom_call.1} parent=1 // pred_region
      %s67 = ssub.s32 4096, 4096
      %68 = vsyncadd [#allocation9], %s67
      %s69 = sshll.u32 [#allocation8], 4
      %s70 = int_to_ptr.vmem [resolvable:$true] %s69
      %75 = dma.hbm_to_vmem [thread:$0]  %s8, 4096, %s70, [#allocation9], 256, 256, 16
    $region37: #{tpu_custom_call.1} parent=1 // pred_fallthru
      _
    // Predicated region
    $region38: #{tpu_custom_call.1} parent=1 // pred_check
      _
    $region39: #{tpu_custom_call.1} parent=1 // pred_check_branch
      %77 = sbr.rel (0) target = $region41
    $region40: #{tpu_custom_call.1} parent=1 // pred_region
      %78 = dma.done [#allocation3], 256
    $region41: #{tpu_custom_call.1} parent=1 // pred_fallthru
      _
    // Predicated region
    $region42: #{tpu_custom_call.1} parent=1 // pred_check
      _
    $region43: #{tpu_custom_call.1} parent=1 // pred_check_branch
      %80 = sbr.rel (0) target = $region45
    $region44: #{tpu_custom_call.1} parent=1 // pred_region
      %81 = dma.done [#allocation6], 1024
    $region45: #{tpu_custom_call.1} parent=1 // pred_fallthru
      _
    // Predicated region
    $region46: #{tpu_custom_call.1} parent=1 // pred_check
      _
    $region47: #{tpu_custom_call.1} parent=1 // pred_check_branch
      %83 = sbr.rel (0) target = $region49
    $region48: #{tpu_custom_call.1} parent=1 // pred_region
      %84 = dma.done [#allocation6], 512
    $region49: #{tpu_custom_call.1} parent=1 // pred_fallthru
      _
    // Predicated region
    $region50: #{tpu_custom_call.1} parent=1 // pred_check
      _
    $region51: #{tpu_custom_call.1} parent=1 // pred_check_branch
      %86 = sbr.rel (0) target = $region53
    $region52: #{tpu_custom_call.1} parent=1 // pred_region
      %87 = dma.done [#allocation9], 4096
    $region53: #{tpu_custom_call.1} parent=1 // pred_fallthru
      _
    %v88 = vld [vmem:[#allocation2] sm:$0xff]
    %v89 = vld [vmem:[#allocation2 + $0x8] sm:$0xff]
    %v90 = vld [vmem:[%s6] sm:$0xff]
    %v91 = vld [vmem:[#allocation7] sm:$0xff]
    %v92 = vld [vmem:[#allocation7 + $0x8] sm:$0xff]
    %v93 = vld [vmem:[#allocation7 + $0x10] sm:$0xff]
    %v94 = vld [vmem:[#allocation7 + $0x18] sm:$0xff]
    %v95 = vld [vmem:[#allocation8] sm:$0xff]
    %v96 = vld [vmem:[#allocation8 + $0x10] sm:$0xff]
    %v97 = vld [vmem:[#allocation8 + $0x20] sm:$0xff]
    %v98 = vld [vmem:[#allocation8 + $0x30] sm:$0xff]
    %v99 = vld [vmem:[#allocation8 + $0x40] sm:$0xff]
    %v100 = vld [vmem:[#allocation8 + $0x50] sm:$0xff]
    %v101 = vld [vmem:[#allocation8 + $0x60] sm:$0xff]
    %v102 = vld [vmem:[#allocation8 + $0x70] sm:$0xff]
    %v103 = vld [vmem:[#allocation8 + $0x80] sm:$0xff]
    %v104 = vld [vmem:[#allocation8 + $0x90] sm:$0xff]
    %v105 = vld [vmem:[#allocation8 + $0xa0] sm:$0xff]
    %v106 = vld [vmem:[#allocation8 + $0xb0] sm:$0xff]
    %v107 = vld [vmem:[#allocation8 + $0xc0] sm:$0xff]
    %v108 = vld [vmem:[#allocation8 + $0xd0] sm:$0xff]
    %v109 = vld [vmem:[#allocation8 + $0xe0] sm:$0xff]
    %v110 = vld [vmem:[#allocation8 + $0xf0] sm:$0xff]
    %v111 = vld [vmem:[#allocation8 + $0x8] sm:$0xff]
    %v112 = vld [vmem:[#allocation8 + $0x18] sm:$0xff]
    %v113 = vld [vmem:[#allocation8 + $0x28] sm:$0xff]
    %v114 = vld [vmem:[#allocation8 + $0x38] sm:$0xff]
    %v115 = vld [vmem:[#allocation8 + $0x48] sm:$0xff]
    %v116 = vld [vmem:[#allocation8 + $0x58] sm:$0xff]
    %v117 = vld [vmem:[#allocation8 + $0x68] sm:$0xff]
    %v118 = vld [vmem:[#allocation8 + $0x78] sm:$0xff]
    %v119 = vld [vmem:[#allocation8 + $0x88] sm:$0xff]
    %v120 = vld [vmem:[#allocation8 + $0x98] sm:$0xff]
    %v121 = vld [vmem:[#allocation8 + $0xa8] sm:$0xff]
    %v122 = vld [vmem:[#allocation8 + $0xb8] sm:$0xff]
    %v123 = vld [vmem:[#allocation8 + $0xc8] sm:$0xff]
    %v124 = vld [vmem:[#allocation8 + $0xd8] sm:$0xff]
    %v125 = vld [vmem:[#allocation8 + $0xe8] sm:$0xff]
    %v126 = vld [vmem:[#allocation8 + $0xf8] sm:$0xff]
    %v127 = vmul.f32 %v88, %v88
    %v128 = vmul.f32 %v89, %v89
    %vm129 = vcmask 523264
    %v130 = vsel %vm129, %v127, 0.0
    %131 = vadd.xlane.f32.xlu0 %v130
    %v132 = vpop.xlane.xlu0 %131
    %v133 = vsel %vm129, %v128, 0.0
    %134 = vadd.xlane.f32.xlu0 %v133
    %v135 = vpop.xlane.xlu0 %134
    %v136 = vrcp.pop 64.0
    %v137 = vmul.f32 %v132, %v136
    %v138 = vmul.f32 %v135, %v136
    %v139 = vadd.f32 %v137, 1e-05
    %v140 = vadd.f32 %v138, 1e-05
    %v141 = vrsqrt.pop %v139
    %v142 = vrsqrt.pop %v140
    %v143 = vmul.f32 %v88, %v141
    %v144 = vmul.f32 %v89, %v142
    %v145 = vlaneseq
    %v146 = vshrl.u32 %v145, 7
    %v147 = vsub.s32 2, %v146
    %v148 = vrot.slane %v90, %v147
    %v149 = vmul.f32 %v143, %v148
    %v150 = vmul.f32 %v144, %v148
    %v151 = vld [vmem:[%s1] sm:$0xff]
    %v152 = vld [vmem:[%s1 + $0x8] sm:$0xff]
    %v153 = vld [vmem:[%s1 + $0x10] sm:$0xff]
    %v154 = vld [vmem:[%s1 + $0x18] sm:$0xff]
    %v155 = vld [vmem:[%s1 + $0x20] sm:$0xff]
    %v156 = vld [vmem:[%s1 + $0x28] sm:$0xff]
    %v157 = vld [vmem:[%s1 + $0x30] sm:$0xff]
    %v158 = vld [vmem:[%s1 + $0x38] sm:$0xff]
    %v160 = vsel %vm129, %v149, 0
    %v163 = vsel %vm129, %v150, 0
    %165 = vmatprep.subr.mxu0 0.0
    %166 = vmatpush1.msra.mxu0 %v151
    %167 = vmatprep.subr.mxu0 0.0
    %168 = vmatpush1.msra.mxu0 %v152
    %169 = vmatprep.subr.mxu0 0.0
    %170 = vmatpush1.msra.mxu0 %v153
    %171 = vmatprep.subr.mxu0 0.0
    %172 = vmatpush1.msra.mxu0 %v154
    %173 = vmatprep.subr.mxu0 0.0
    %174 = vmatpush1.msra.mxu0 %v155
    %175 = vmatprep.subr.mxu0 0.0
    %176 = vmatpush1.msra.mxu0 %v156
    %177 = vmatprep.subr.mxu0 0.0
    %178 = vmatpush1.msra.mxu0 %v157
    %179 = vmatprep.subr.mxu0 0.0
    %180 = vmatpush1.msra.mxu0 %v158
    %181 = vmatprep.subr.mxu0 0.0
    %182 = vmatpush1.msra.mxu0 0.0
    %183 = vmatprep.subr.mxu0 0.0
    %184 = vmatpush1.msra.mxu0 0.0
    %185 = vmatprep.subr.mxu0 0.0
    %186 = vmatpush1.msra.mxu0 0.0
    %187 = vmatprep.subr.mxu0 0.0
    %188 = vmatpush1.msra.mxu0 0.0
    %189 = vmatprep.subr.mxu0 0.0
    %190 = vmatpush1.msra.mxu0 0.0
    %191 = vmatprep.subr.mxu0 0.0
    %192 = vmatpush1.msra.mxu0 0.0
    %193 = vmatprep.subr.mxu0 0.0
    %194 = vmatpush1.msra.mxu0 0.0
    %195 = vmatprep.subr.mxu0 0.0
    %196 = vmatpush1.msra.mxu0 0.0
    %197 = vmatprep.subr.mxu0 0.0
    %198 = vmatpush1.msra.mxu0 0.0
    %199 = vmatprep.subr.mxu0 0.0
    %200 = vmatpush1.msra.mxu0 0.0
    %201 = vmatprep.subr.mxu0 0.0
    %202 = vmatpush1.msra.mxu0 0.0
    %203 = vmatprep.subr.mxu0 0.0
    %204 = vmatpush1.msra.mxu0 0.0
    %205 = vmatprep.subr.mxu0 0.0
    %206 = vmatpush1.msra.mxu0 0.0
    %207 = vmatprep.subr.mxu0 0.0
    %208 = vmatpush1.msra.mxu0 0.0
    %209 = vmatprep.subr.mxu0 0.0
    %210 = vmatpush1.msra.mxu0 0.0
    %211 = vmatprep.subr.mxu0 0.0
    %212 = vmatpush1.msra.mxu0 0.0
    %213 = vmatprep.subr.mxu0 0.0
    %214 = vmatpush1.msra.mxu0 0.0
    %215 = vmatprep.subr.mxu0 0.0
    %216 = vmatpush1.msra.mxu0 0.0
    %217 = vmatprep.subr.mxu0 0.0
    %218 = vmatpush1.msra.mxu0 0.0
    %219 = vmatprep.subr.mxu0 0.0
    %220 = vmatpush1.msra.mxu0 0.0
    %221 = vmatprep.subr.mxu0 0.0
    %222 = vmatpush1.msra.mxu0 0.0
    %223 = vmatprep.subr.mxu0 0.0
    %224 = vmatpush1.msra.mxu0 0.0
    %225 = vmatprep.subr.mxu0 0.0
    %226 = vmatpush1.msra.mxu0 0.0
    %227 = vmatprep.subr.mxu0 0.0
    %228 = vmatpush1.msra.mxu0 0.0
    %229 = vmatprep.mubr.f32.mxu0 0.0
    %230 = vmatmul.mubr.f32.gmra.mrb[0].mxu0 %v160
    %v231 = vpop.f32.mrb[0].mxu0
    %v232 = vadd.f32 0.0, %v231
    %v233 = vpop.f32.mrb[0].mxu0
    %234 = vmatprep.mubr.f32.mxu0 0.0
    %235 = vmatmul.mubr.f32.gmra.mrb[0].mxu0 %v163
    %v236 = vpop.f32.mrb[0].mxu0
    %v237 = vadd.f32 0.0, %v236
    %v238 = vpop.f32.mrb[0].mxu0
    %239 = vdwg.mxu0
    %v240 = vld [vmem:[%s2] sm:$0xff]
    %v241 = vld [vmem:[%s2 + $0x8] sm:$0xff]
    %v242 = vld [vmem:[%s2 + $0x10] sm:$0xff]
    %v243 = vld [vmem:[%s2 + $0x18] sm:$0xff]
    %v244 = vld [vmem:[%s2 + $0x20] sm:$0xff]
    %v245 = vld [vmem:[%s2 + $0x28] sm:$0xff]
    %v246 = vld [vmem:[%s2 + $0x30] sm:$0xff]
    %v247 = vld [vmem:[%s2 + $0x38] sm:$0xff]
    %248 = vmatprep.subr.mxu0 0.0
    %249 = vmatpush1.msra.mxu0 %v240
    %250 = vmatprep.subr.mxu0 0.0
    %251 = vmatpush1.msra.mxu0 %v241
    %252 = vmatprep.subr.mxu0 0.0
    %253 = vmatpush1.msra.mxu0 %v242
    %254 = vmatprep.subr.mxu0 0.0
    %255 = vmatpush1.msra.mxu0 %v243
    %256 = vmatprep.subr.mxu0 0.0
    %257 = vmatpush1.msra.mxu0 %v244
    %258 = vmatprep.subr.mxu0 0.0
    %259 = vmatpush1.msra.mxu0 %v245
    %260 = vmatprep.subr.mxu0 0.0
    %261 = vmatpush1.msra.mxu0 %v246
    %262 = vmatprep.subr.mxu0 0.0
    %263 = vmatpush1.msra.mxu0 %v247
    %264 = vmatprep.subr.mxu0 0.0
    %265 = vmatpush1.msra.mxu0 0.0
    %266 = vmatprep.subr.mxu0 0.0
    %267 = vmatpush1.msra.mxu0 0.0
    %268 = vmatprep.subr.mxu0 0.0
    %269 = vmatpush1.msra.mxu0 0.0
    %270 = vmatprep.subr.mxu0 0.0
    %271 = vmatpush1.msra.mxu0 0.0
    %272 = vmatprep.subr.mxu0 0.0
    %273 = vmatpush1.msra.mxu0 0.0
    %274 = vmatprep.subr.mxu0 0.0
    %275 = vmatpush1.msra.mxu0 0.0
    %276 = vmatprep.subr.mxu0 0.0
    %277 = vmatpush1.msra.mxu0 0.0
    %278 = vmatprep.subr.mxu0 0.0
    %279 = vmatpush1.msra.mxu0 0.0
    %280 = vmatprep.subr.mxu0 0.0
    %281 = vmatpush1.msra.mxu0 0.0
    %282 = vmatprep.subr.mxu0 0.0
    %283 = vmatpush1.msra.mxu0 0.0
    %284 = vmatprep.subr.mxu0 0.0
    %285 = vmatpush1.msra.mxu0 0.0
    %286 = vmatprep.subr.mxu0 0.0
    %287 = vmatpush1.msra.mxu0 0.0
    %288 = vmatprep.subr.mxu0 0.0
    %289 = vmatpush1.msra.mxu0 0.0
    %290 = vmatprep.subr.mxu0 0.0
    %291 = vmatpush1.msra.mxu0 0.0
    %292 = vmatprep.subr.mxu0 0.0
    %293 = vmatpush1.msra.mxu0 0.0
    %294 = vmatprep.subr.mxu0 0.0
    %295 = vmatpush1.msra.mxu0 0.0
    %296 = vmatprep.subr.mxu0 0.0
    %297 = vmatpush1.msra.mxu0 0.0
    %298 = vmatprep.subr.mxu0 0.0
    %299 = vmatpush1.msra.mxu0 0.0
    %300 = vmatprep.subr.mxu0 0.0
    %301 = vmatpush1.msra.mxu0 0.0
    %302 = vmatprep.subr.mxu0 0.0
    %303 = vmatpush1.msra.mxu0 0.0
    %304 = vmatprep.subr.mxu0 0.0
    %305 = vmatpush1.msra.mxu0 0.0
    %306 = vmatprep.subr.mxu0 0.0
    %307 = vmatpush1.msra.mxu0 0.0
    %308 = vmatprep.subr.mxu0 0.0
    %309 = vmatpush1.msra.mxu0 0.0
    %310 = vmatprep.subr.mxu0 0.0
    %311 = vmatpush1.msra.mxu0 0.0
    %312 = vmatprep.mubr.f32.mxu0 0.0
    %313 = vmatmul.mubr.f32.gmra.mrb[0].mxu0 %v160
    %v314 = vpop.f32.mrb[0].mxu0
    %v315 = vadd.f32 0.0, %v314
    %v316 = vpop.f32.mrb[0].mxu0
    %317 = vmatprep.mubr.f32.mxu0 0.0
    %318 = vmatmul.mubr.f32.gmra.mrb[0].mxu0 %v163
    %v319 = vpop.f32.mrb[0].mxu0
    %v320 = vadd.f32 0.0, %v319
    %v321 = vpop.f32.mrb[0].mxu0
    %322 = vdwg.mxu0
    %323 = vmatprep.subr.mxu0 0.0
    %324 = vmatpush1.msra.mxu0 %v95
    %325 = vmatprep.subr.mxu0 0.0
    %326 = vmatpush1.msra.mxu0 %v96
    %327 = vmatprep.subr.mxu0 0.0
    %328 = vmatpush1.msra.mxu0 %v97
    %329 = vmatprep.subr.mxu0 0.0
    %330 = vmatpush1.msra.mxu0 %v98
    %331 = vmatprep.subr.mxu0 0.0
    %332 = vmatpush1.msra.mxu0 %v99
    %333 = vmatprep.subr.mxu0 0.0
    %334 = vmatpush1.msra.mxu0 %v100
    %335 = vmatprep.subr.mxu0 0.0
    %336 = vmatpush1.msra.mxu0 %v101
    %337 = vmatprep.subr.mxu0 0.0
    %338 = vmatpush1.msra.mxu0 %v102
    %339 = vmatprep.subr.mxu0 0.0
    %340 = vmatpush1.msra.mxu0 %v103
    %341 = vmatprep.subr.mxu0 0.0
    %342 = vmatpush1.msra.mxu0 %v104
    %343 = vmatprep.subr.mxu0 0.0
    %344 = vmatpush1.msra.mxu0 %v105
    %345 = vmatprep.subr.mxu0 0.0
    %346 = vmatpush1.msra.mxu0 %v106
    %347 = vmatprep.subr.mxu0 0.0
    %348 = vmatpush1.msra.mxu0 %v107
    %349 = vmatprep.subr.mxu0 0.0
    %350 = vmatpush1.msra.mxu0 %v108
    %351 = vmatprep.subr.mxu0 0.0
    %352 = vmatpush1.msra.mxu0 %v109
    %353 = vmatprep.subr.mxu0 0.0
    %354 = vmatpush1.msra.mxu0 %v110
    %355 = vmatprep.subr.mxu0 0.0
    %356 = vmatpush1.msra.mxu0 0.0
    %357 = vmatprep.subr.mxu0 0.0
    %358 = vmatpush1.msra.mxu0 0.0
    %359 = vmatprep.subr.mxu0 0.0
    %360 = vmatpush1.msra.mxu0 0.0
    %361 = vmatprep.subr.mxu0 0.0
    %362 = vmatpush1.msra.mxu0 0.0
    %363 = vmatprep.subr.mxu0 0.0
    %364 = vmatpush1.msra.mxu0 0.0
    %365 = vmatprep.subr.mxu0 0.0
    %366 = vmatpush1.msra.mxu0 0.0
    %367 = vmatprep.subr.mxu0 0.0
    %368 = vmatpush1.msra.mxu0 0.0
    %369 = vmatprep.subr.mxu0 0.0
    %370 = vmatpush1.msra.mxu0 0.0
    %371 = vmatprep.subr.mxu0 0.0
    %372 = vmatpush1.msra.mxu0 0.0
    %373 = vmatprep.subr.mxu0 0.0
    %374 = vmatpush1.msra.mxu0 0.0
    %375 = vmatprep.subr.mxu0 0.0
    %376 = vmatpush1.msra.mxu0 0.0
    %377 = vmatprep.subr.mxu0 0.0
    %378 = vmatpush1.msra.mxu0 0.0
    %379 = vmatprep.subr.mxu0 0.0
    %380 = vmatpush1.msra.mxu0 0.0
    %381 = vmatprep.subr.mxu0 0.0
    %382 = vmatpush1.msra.mxu0 0.0
    %383 = vmatprep.subr.mxu0 0.0
    %384 = vmatpush1.msra.mxu0 0.0
    %385 = vmatprep.subr.mxu0 0.0
    %386 = vmatpush1.msra.mxu0 0.0
    %387 = vmatprep.mubr.f32.mxu0 0.0
    %388 = vmatmul.mubr.f32.gmra.mrb[0].mxu0 %v232
    %v389 = vpop.f32.mrb[0].mxu0
    %v390 = vadd.f32 0.0, %v389
    %v391 = vpop.f32.mrb[0].mxu0
    %392 = vmatprep.mubr.f32.mxu0 0.0
    %393 = vmatmul.mubr.f32.gmra.mrb[0].mxu0 %v237
    %v394 = vpop.f32.mrb[0].mxu0
    %v395 = vadd.f32 0.0, %v394
    %v396 = vpop.f32.mrb[0].mxu0
    %397 = vdwg.mxu0
    %v398 = vmul.f32 %v232, %v232
    %v399 = vmul.f32 %v237, %v237
    %400 = vmatprep.subr.mxu0 0.0
    %401 = vmatpush1.msra.mxu0 %v95
    %402 = vmatprep.subr.mxu0 0.0
    %403 = vmatpush1.msra.mxu0 %v96
    %404 = vmatprep.subr.mxu0 0.0
    %405 = vmatpush1.msra.mxu0 %v97
    %406 = vmatprep.subr.mxu0 0.0
    %407 = vmatpush1.msra.mxu0 %v98
    %408 = vmatprep.subr.mxu0 0.0
    %409 = vmatpush1.msra.mxu0 %v99
    %410 = vmatprep.subr.mxu0 0.0
    %411 = vmatpush1.msra.mxu0 %v100
    %412 = vmatprep.subr.mxu0 0.0
    %413 = vmatpush1.msra.mxu0 %v101
    %414 = vmatprep.subr.mxu0 0.0
    %415 = vmatpush1.msra.mxu0 %v102
    %416 = vmatprep.subr.mxu0 0.0
    %417 = vmatpush1.msra.mxu0 %v103
    %418 = vmatprep.subr.mxu0 0.0
    %419 = vmatpush1.msra.mxu0 %v104
    %420 = vmatprep.subr.mxu0 0.0
    %421 = vmatpush1.msra.mxu0 %v105
    %422 = vmatprep.subr.mxu0 0.0
    %423 = vmatpush1.msra.mxu0 %v106
    %424 = vmatprep.subr.mxu0 0.0
    %425 = vmatpush1.msra.mxu0 %v107
    %426 = vmatprep.subr.mxu0 0.0
    %427 = vmatpush1.msra.mxu0 %v108
    %428 = vmatprep.subr.mxu0 0.0
    %429 = vmatpush1.msra.mxu0 %v109
    %430 = vmatprep.subr.mxu0 0.0
    %431 = vmatpush1.msra.mxu0 %v110
    %432 = vmatprep.subr.mxu0 0.0
    %433 = vmatpush1.msra.mxu0 0.0
    %434 = vmatprep.subr.mxu0 0.0
    %435 = vmatpush1.msra.mxu0 0.0
    %436 = vmatprep.subr.mxu0 0.0
    %437 = vmatpush1.msra.mxu0 0.0
    %438 = vmatprep.subr.mxu0 0.0
    %439 = vmatpush1.msra.mxu0 0.0
    %440 = vmatprep.subr.mxu0 0.0
    %441 = vmatpush1.msra.mxu0 0.0
    %442 = vmatprep.subr.mxu0 0.0
    %443 = vmatpush1.msra.mxu0 0.0
    %444 = vmatprep.subr.mxu0 0.0
    %445 = vmatpush1.msra.mxu0 0.0
    %446 = vmatprep.subr.mxu0 0.0
    %447 = vmatpush1.msra.mxu0 0.0
    %448 = vmatprep.subr.mxu0 0.0
    %449 = vmatpush1.msra.mxu0 0.0
    %450 = vmatprep.subr.mxu0 0.0
    %451 = vmatpush1.msra.mxu0 0.0
    %452 = vmatprep.subr.mxu0 0.0
    %453 = vmatpush1.msra.mxu0 0.0
    %454 = vmatprep.subr.mxu0 0.0
    %455 = vmatpush1.msra.mxu0 0.0
    %456 = vmatprep.subr.mxu0 0.0
    %457 = vmatpush1.msra.mxu0 0.0
    %458 = vmatprep.subr.mxu0 0.0
    %459 = vmatpush1.msra.mxu0 0.0
    %460 = vmatprep.subr.mxu0 0.0
    %461 = vmatpush1.msra.mxu0 0.0
    %462 = vmatprep.subr.mxu0 0.0
    %463 = vmatpush1.msra.mxu0 0.0
    %464 = vmatprep.mubr.f32.mxu0 0.0
    %465 = vmatmul.mubr.f32.gmra.mrb[0].mxu0 %v398
    %v466 = vpop.f32.mrb[0].mxu0
    %v467 = vadd.f32 0.0, %v466
    %v468 = vpop.f32.mrb[0].mxu0
    %469 = vmatprep.mubr.f32.mxu0 0.0
    %470 = vmatmul.mubr.f32.gmra.mrb[0].mxu0 %v399
    %v471 = vpop.f32.mrb[0].mxu0
    %v472 = vadd.f32 0.0, %v471
    %v473 = vpop.f32.mrb[0].mxu0
    %474 = vdwg.mxu0
    %v475 = vmul.f32 %v390, %v390
    %v476 = vmul.f32 %v395, %v395
    %v477 = vsub.f32 %v467, %v475
    %v478 = vsub.f32 %v472, %v476
    %v479 = vsub.f32 %v232, %v390
    %v480 = vsub.f32 %v237, %v395
    %v481 = vadd.f32 %v477, 1e-05
    %v482 = vadd.f32 %v478, 1e-05
    %v483 = vrsqrt.pop %v481
    %v484 = vrsqrt.pop %v482
    %v485 = vmul.f32 %v479, %v483
    %v486 = vmul.f32 %v480, %v484
    %v487 = vlaneseq
    %v488 = vshrl.u32 %v487, 7
    %v489 = vsub.s32 0, %v488
    %v490 = vrot.slane %v90, %v489
    %v491 = vmul.f32 %v485, %v490
    %v492 = vmul.f32 %v486, %v490
    %v493 = vlaneseq
    %v494 = vshrl.u32 %v493, 7
    %v495 = vsub.s32 1, %v494
    %v496 = vrot.slane %v90, %v495
    %v497 = vadd.f32 %v491, %v496
    %v498 = vadd.f32 %v492, %v496
    %v499 = vmul.f32 %v497, %v91
    %v500 = vmul.f32 %v498, %v92
    %501 = vmatprep.subr.mxu0 0.0
    %502 = vmatpush1.msra.mxu0 %v111
    %503 = vmatprep.subr.mxu0 0.0
    %504 = vmatpush1.msra.mxu0 %v112
    %505 = vmatprep.subr.mxu0 0.0
    %506 = vmatpush1.msra.mxu0 %v113
    %507 = vmatprep.subr.mxu0 0.0
    %508 = vmatpush1.msra.mxu0 %v114
    %509 = vmatprep.subr.mxu0 0.0
    %510 = vmatpush1.msra.mxu0 %v115
    %511 = vmatprep.subr.mxu0 0.0
    %512 = vmatpush1.msra.mxu0 %v116
    %513 = vmatprep.subr.mxu0 0.0
    %514 = vmatpush1.msra.mxu0 %v117
    %515 = vmatprep.subr.mxu0 0.0
    %516 = vmatpush1.msra.mxu0 %v118
    %517 = vmatprep.subr.mxu0 0.0
    %518 = vmatpush1.msra.mxu0 %v119
    %519 = vmatprep.subr.mxu0 0.0
    %520 = vmatpush1.msra.mxu0 %v120
    %521 = vmatprep.subr.mxu0 0.0
    %522 = vmatpush1.msra.mxu0 %v121
    %523 = vmatprep.subr.mxu0 0.0
    %524 = vmatpush1.msra.mxu0 %v122
    %525 = vmatprep.subr.mxu0 0.0
    %526 = vmatpush1.msra.mxu0 %v123
    %527 = vmatprep.subr.mxu0 0.0
    %528 = vmatpush1.msra.mxu0 %v124
    %529 = vmatprep.subr.mxu0 0.0
    %530 = vmatpush1.msra.mxu0 %v125
    %531 = vmatprep.subr.mxu0 0.0
    %532 = vmatpush1.msra.mxu0 %v126
    %533 = vmatprep.subr.mxu0 0.0
    %534 = vmatpush1.msra.mxu0 0.0
    %535 = vmatprep.subr.mxu0 0.0
    %536 = vmatpush1.msra.mxu0 0.0
    %537 = vmatprep.subr.mxu0 0.0
    %538 = vmatpush1.msra.mxu0 0.0
    %539 = vmatprep.subr.mxu0 0.0
    %540 = vmatpush1.msra.mxu0 0.0
    %541 = vmatprep.subr.mxu0 0.0
    %542 = vmatpush1.msra.mxu0 0.0
    %543 = vmatprep.subr.mxu0 0.0
    %544 = vmatpush1.msra.mxu0 0.0
    %545 = vmatprep.subr.mxu0 0.0
    %546 = vmatpush1.msra.mxu0 0.0
    %547 = vmatprep.subr.mxu0 0.0
    %548 = vmatpush1.msra.mxu0 0.0
    %549 = vmatprep.subr.mxu0 0.0
    %550 = vmatpush1.msra.mxu0 0.0
    %551 = vmatprep.subr.mxu0 0.0
    %552 = vmatpush1.msra.mxu0 0.0
    %553 = vmatprep.subr.mxu0 0.0
    %554 = vmatpush1.msra.mxu0 0.0
    %555 = vmatprep.subr.mxu0 0.0
    %556 = vmatpush1.msra.mxu0 0.0
    %557 = vmatprep.subr.mxu0 0.0
    %558 = vmatpush1.msra.mxu0 0.0
    %559 = vmatprep.subr.mxu0 0.0
    %560 = vmatpush1.msra.mxu0 0.0
    %561 = vmatprep.subr.mxu0 0.0
    %562 = vmatpush1.msra.mxu0 0.0
    %563 = vmatprep.subr.mxu0 0.0
    %564 = vmatpush1.msra.mxu0 0.0
    %565 = vmatprep.mubr.f32.mxu0 0.0
    %566 = vmatmul.mubr.f32.gmra.mrb[0].mxu0 %v497
    %v567 = vpop.f32.mrb[0].mxu0
    %v568 = vadd.f32 0.0, %v567
    %v569 = vpop.f32.mrb[0].mxu0
    %570 = vmatprep.mubr.f32.mxu0 0.0
    %571 = vmatmul.mubr.f32.gmra.mrb[0].mxu0 %v498
    %v572 = vpop.f32.mrb[0].mxu0
    %v573 = vadd.f32 0.0, %v572
    %v574 = vpop.f32.mrb[0].mxu0
    %575 = vdwg.mxu0
    %v576 = vmul.f32 %v568, %v93
    %v577 = vmul.f32 %v573, %v94
    %v578 = vadd.f32 %v499, %v576
    %v579 = vadd.f32 %v500, %v577
    %v580 = vlaneseq
    %v581 = vshrl.u32 %v580, 7
    %v582 = vadd.s32 %v581, 8
    %v583 = vlaneseq
    %v584 = vand.u32 %v583, 127
    %v585 = vshra.s32 %v581, 3
    %v586 = vshra.s32 %v582, 3
    %v587 = vshra.s32 %v584, 3
    %vm588 = vcmp.eq.s32.totalorder %v585, %v587
    %vm589 = vcmp.eq.s32.totalorder %v586, %v587
    %vm590 = vcmp.le.s32.totalorder %v584, %v581
    %vm591 = vcmp.le.s32.totalorder %v584, %v582
    %vm592 = vmand %vm588, %vm590
    %vm593 = vmand %vm589, %vm591
    %v594 = vsel %vm592, 0.0, -1e+09
    %v595 = vsel %vm593, 0.0, -1e+09
    %598 = vrot.lane.b32.xlu0 %v578, 64
    %v599 = vpop.permute.xlu0 %598
    %600 = vrot.lane.b32.xlu0 %v579, 64
    %v601 = vpop.permute.xlu0 %600
    %vm602 = vcmask 130048
    %v603 = vsel %vm602, %v578, 0
    %v605 = vsel %vm602, %v579, 0
    %v607 = vsel %vm602, %v599, 0
    %v609 = vsel %vm602, %v601, 0
    %611 = vmatprep.subr.mxu0 0.0
    %612 = vmatpush1.xpose.msra.mxu0 %v607
    %613 = vmatprep.subr.mxu0 0.0
    %614 = vmatpush1.xpose.msra.mxu0 %v609
    %615 = vmatprep.subr.mxu0 0.0
    %616 = vmatpush1.xpose.msra.mxu0 0.0
    %617 = vmatprep.subr.mxu0 0.0
    %618 = vmatpush1.xpose.msra.mxu0 0.0
    %619 = vmatprep.subr.mxu0 0.0
    %620 = vmatpush1.xpose.msra.mxu0 0.0
    %621 = vmatprep.subr.mxu0 0.0
    %622 = vmatpush1.xpose.msra.mxu0 0.0
    %623 = vmatprep.subr.mxu0 0.0
    %624 = vmatpush1.xpose.msra.mxu0 0.0
    %625 = vmatprep.subr.mxu0 0.0
    %626 = vmatpush1.xpose.msra.mxu0 0.0
    %627 = vmatprep.subr.mxu0 0.0
    %628 = vmatpush1.xpose.msra.mxu0 0.0
    %629 = vmatprep.subr.mxu0 0.0
    %630 = vmatpush1.xpose.msra.mxu0 0.0
    %631 = vmatprep.subr.mxu0 0.0
    %632 = vmatpush1.xpose.msra.mxu0 0.0
    %633 = vmatprep.subr.mxu0 0.0
    %634 = vmatpush1.xpose.msra.mxu0 0.0
    %635 = vmatprep.subr.mxu0 0.0
    %636 = vmatpush1.xpose.msra.mxu0 0.0
    %637 = vmatprep.subr.mxu0 0.0
    %638 = vmatpush1.xpose.msra.mxu0 0.0
    %639 = vmatprep.subr.mxu0 0.0
    %640 = vmatpush1.xpose.msra.mxu0 0.0
    %641 = vmatprep.subr.mxu0 0.0
    %642 = vmatpush1.xpose.msra.mxu0 0.0
    %643 = vmatprep.subr.mxu0 0.0
    %644 = vmatpush1.xpose.msra.mxu0 0.0
    %645 = vmatprep.subr.mxu0 0.0
    %646 = vmatpush1.xpose.msra.mxu0 0.0
    %647 = vmatprep.subr.mxu0 0.0
    %648 = vmatpush1.xpose.msra.mxu0 0.0
    %649 = vmatprep.subr.mxu0 0.0
    %650 = vmatpush1.xpose.msra.mxu0 0.0
    %651 = vmatprep.subr.mxu0 0.0
    %652 = vmatpush1.xpose.msra.mxu0 0.0
    %653 = vmatprep.subr.mxu0 0.0
    %654 = vmatpush1.xpose.msra.mxu0 0.0
    %655 = vmatprep.subr.mxu0 0.0
    %656 = vmatpush1.xpose.msra.mxu0 0.0
    %657 = vmatprep.subr.mxu0 0.0
    %658 = vmatpush1.xpose.msra.mxu0 0.0
    %659 = vmatprep.subr.mxu0 0.0
    %660 = vmatpush1.xpose.msra.mxu0 0.0
    %661 = vmatprep.subr.mxu0 0.0
    %662 = vmatpush1.xpose.msra.mxu0 0.0
    %663 = vmatprep.subr.mxu0 0.0
    %664 = vmatpush1.xpose.msra.mxu0 0.0
    %665 = vmatprep.subr.mxu0 0.0
    %666 = vmatpush1.xpose.msra.mxu0 0.0
    %667 = vmatprep.subr.mxu0 0.0
    %668 = vmatpush1.xpose.msra.mxu0 0.0
    %669 = vmatprep.subr.mxu0 0.0
    %670 = vmatpush1.xpose.msra.mxu0 0.0
    %671 = vmatprep.subr.mxu0 0.0
    %672 = vmatpush1.xpose.msra.mxu0 0.0
    %673 = vmatprep.subr.mxu0 0.0
    %674 = vmatpush1.xpose.msra.mxu0 0.0
    %675 = vmatprep.mubr.f32.mxu0 0.0
    %676 = vmatmul.mubr.f32.gmra.mrb[0].mxu0 %v603
    %v677 = vpop.f32.mrb[0].mxu0
    %v678 = vadd.f32 0.0, %v677
    %v679 = vpop.f32.mrb[0].mxu0
    %680 = vmatprep.mubr.f32.mxu0 0.0
    %681 = vmatmul.mubr.f32.gmra.mrb[0].mxu0 %v605
    %v682 = vpop.f32.mrb[0].mxu0
    %v683 = vadd.f32 0.0, %v682
    %v684 = vpop.f32.mrb[0].mxu0
    %685 = vdwg.mxu0
    %v686 = vmul.f32 %v678, 0.25
    %v687 = vmul.f32 %v683, 0.25
    %v688 = vadd.f32 %v686, %v594
    %v689 = vadd.f32 %v687, %v595
    %v690 = vsel %vm602, %v688, -inf
    %691 = vmax.xlane.f32.xlu0 %v690
    %v692 = vpop.xlane.xlu0 %691
    %v693 = vsel %vm602, %v689, -inf
    %694 = vmax.xlane.f32.xlu0 %v693
    %v695 = vpop.xlane.xlu0 %694
    %v696 = vsub.f32 %v688, %v692
    %v697 = vsub.f32 %v689, %v695
    %v698 = vmul.f32 %v696, 1.442695
    %v699 = vpow.pop %v698
    %v700 = vmul.f32 %v697, 1.442695
    %v701 = vpow.pop %v700
    %v702 = vsel %vm602, %v699, 0.0
    %703 = vadd.xlane.f32.xlu0 %v702
    %v704 = vpop.xlane.xlu0 %703
    %v705 = vsel %vm602, %v701, 0.0
    %706 = vadd.xlane.f32.xlu0 %v705
    %v707 = vpop.xlane.xlu0 %706
    %v708 = vrcp.pop %v704
    %v709 = vrcp.pop %v707
    %v710 = vmul.f32 %v699, %v708
    %v711 = vmul.f32 %v701, %v709
    %v713 = vsel %vm602, %v710, 0
    %v716 = vsel %vm602, %v711, 0
    %718 = vmatprep.subr.mxu0 0.0
    %719 = vmatpush1.msra.mxu0 %v315
    %720 = vmatprep.subr.mxu0 0.0
    %721 = vmatpush1.msra.mxu0 %v320
    %722 = vmatprep.subr.mxu0 0.0
    %723 = vmatpush1.msra.mxu0 0.0
    %724 = vmatprep.subr.mxu0 0.0
    %725 = vmatpush1.msra.mxu0 0.0
    %726 = vmatprep.subr.mxu0 0.0
    %727 = vmatpush1.msra.mxu0 0.0
    %728 = vmatprep.subr.mxu0 0.0
    %729 = vmatpush1.msra.mxu0 0.0
    %730 = vmatprep.subr.mxu0 0.0
    %731 = vmatpush1.msra.mxu0 0.0
    %732 = vmatprep.subr.mxu0 0.0
    %733 = vmatpush1.msra.mxu0 0.0
    %734 = vmatprep.subr.mxu0 0.0
    %735 = vmatpush1.msra.mxu0 0.0
    %736 = vmatprep.subr.mxu0 0.0
    %737 = vmatpush1.msra.mxu0 0.0
    %738 = vmatprep.subr.mxu0 0.0
    %739 = vmatpush1.msra.mxu0 0.0
    %740 = vmatprep.subr.mxu0 0.0
    %741 = vmatpush1.msra.mxu0 0.0
    %742 = vmatprep.subr.mxu0 0.0
    %743 = vmatpush1.msra.mxu0 0.0
    %744 = vmatprep.subr.mxu0 0.0
    %745 = vmatpush1.msra.mxu0 0.0
    %746 = vmatprep.subr.mxu0 0.0
    %747 = vmatpush1.msra.mxu0 0.0
    %748 = vmatprep.subr.mxu0 0.0
    %749 = vmatpush1.msra.mxu0 0.0
    %750 = vmatprep.subr.mxu0 0.0
    %751 = vmatpush1.msra.mxu0 0.0
    %752 = vmatprep.subr.mxu0 0.0
    %753 = vmatpush1.msra.mxu0 0.0
    %754 = vmatprep.subr.mxu0 0.0
    %755 = vmatpush1.msra.mxu0 0.0
    %756 = vmatprep.subr.mxu0 0.0
    %757 = vmatpush1.msra.mxu0 0.0
    %758 = vmatprep.subr.mxu0 0.0
    %759 = vmatpush1.msra.mxu0 0.0
    %760 = vmatprep.subr.mxu0 0.0
    %761 = vmatpush1.msra.mxu0 0.0
    %762 = vmatprep.subr.mxu0 0.0
    %763 = vmatpush1.msra.mxu0 0.0
    %764 = vmatprep.subr.mxu0 0.0
    %765 = vmatpush1.msra.mxu0 0.0
    %766 = vmatprep.subr.mxu0 0.0
    %767 = vmatpush1.msra.mxu0 0.0
    %768 = vmatprep.subr.mxu0 0.0
    %769 = vmatpush1.msra.mxu0 0.0
    %770 = vmatprep.subr.mxu0 0.0
    %771 = vmatpush1.msra.mxu0 0.0
    %772 = vmatprep.subr.mxu0 0.0
    %773 = vmatpush1.msra.mxu0 0.0
    %774 = vmatprep.subr.mxu0 0.0
    %775 = vmatpush1.msra.mxu0 0.0
    %776 = vmatprep.subr.mxu0 0.0
    %777 = vmatpush1.msra.mxu0 0.0
    %778 = vmatprep.subr.mxu0 0.0
    %779 = vmatpush1.msra.mxu0 0.0
    %780 = vmatprep.subr.mxu0 0.0
    %781 = vmatpush1.msra.mxu0 0.0
    %782 = vmatprep.mubr.f32.mxu0 0.0
    %783 = vmatmul.mubr.f32.gmra.mrb[0].mxu0 %v713
    %v784 = vpop.f32.mrb[0].mxu0
    %v785 = vadd.f32 0.0, %v784
    %v786 = vpop.f32.mrb[0].mxu0
    %787 = vmatprep.mubr.f32.mxu0 0.0
    %788 = vmatmul.mubr.f32.gmra.mrb[0].mxu0 %v716
    %v789 = vpop.f32.mrb[0].mxu0
    %v790 = vadd.f32 0.0, %v789
    %v791 = vpop.f32.mrb[0].mxu0
    %792 = vdwg.mxu0
    %v793 = vld [vmem:[#allocation5] sm:$0xff]
    %v794 = vld [vmem:[#allocation5 + $0x8] sm:$0xff]
    %795 = vrot.lane.b32.xlu0 %v578, 112
    %v796 = vpop.permute.xlu0 %795
    %797 = vrot.lane.b32.xlu0 %v579, 112
    %v798 = vpop.permute.xlu0 %797
    %799 = vrot.lane.b32.xlu0 %v578, 48
    %v800 = vpop.permute.xlu0 %799
    %801 = vrot.lane.b32.xlu0 %v579, 48
    %v802 = vpop.permute.xlu0 %801
    %v803 = vsel %vm602, %v796, 0
    %v805 = vsel %vm602, %v798, 0
    %v807 = vsel %vm602, %v800, 0
    %v809 = vsel %vm602, %v802, 0
    %811 = vmatprep.subr.mxu0 0.0
    %812 = vmatpush1.xpose.msra.mxu0 %v807
    %813 = vmatprep.subr.mxu0 0.0
    %814 = vmatpush1.xpose.msra.mxu0 %v809
    %815 = vmatprep.subr.mxu0 0.0
    %816 = vmatpush1.xpose.msra.mxu0 0.0
    %817 = vmatprep.subr.mxu0 0.0
    %818 = vmatpush1.xpose.msra.mxu0 0.0
    %819 = vmatprep.subr.mxu0 0.0
    %820 = vmatpush1.xpose.msra.mxu0 0.0
    %821 = vmatprep.subr.mxu0 0.0
    %822 = vmatpush1.xpose.msra.mxu0 0.0
    %823 = vmatprep.subr.mxu0 0.0
    %824 = vmatpush1.xpose.msra.mxu0 0.0
    %825 = vmatprep.subr.mxu0 0.0
    %826 = vmatpush1.xpose.msra.mxu0 0.0
    %827 = vmatprep.subr.mxu0 0.0
    %828 = vmatpush1.xpose.msra.mxu0 0.0
    %829 = vmatprep.subr.mxu0 0.0
    %830 = vmatpush1.xpose.msra.mxu0 0.0
    %831 = vmatprep.subr.mxu0 0.0
    %832 = vmatpush1.xpose.msra.mxu0 0.0
    %833 = vmatprep.subr.mxu0 0.0
    %834 = vmatpush1.xpose.msra.mxu0 0.0
    %835 = vmatprep.subr.mxu0 0.0
    %836 = vmatpush1.xpose.msra.mxu0 0.0
    %837 = vmatprep.subr.mxu0 0.0
    %838 = vmatpush1.xpose.msra.mxu0 0.0
    %839 = vmatprep.subr.mxu0 0.0
    %840 = vmatpush1.xpose.msra.mxu0 0.0
    %841 = vmatprep.subr.mxu0 0.0
    %842 = vmatpush1.xpose.msra.mxu0 0.0
    %843 = vmatprep.subr.mxu0 0.0
    %844 = vmatpush1.xpose.msra.mxu0 0.0
    %845 = vmatprep.subr.mxu0 0.0
    %846 = vmatpush1.xpose.msra.mxu0 0.0
    %847 = vmatprep.subr.mxu0 0.0
    %848 = vmatpush1.xpose.msra.mxu0 0.0
    %849 = vmatprep.subr.mxu0 0.0
    %850 = vmatpush1.xpose.msra.mxu0 0.0
    %851 = vmatprep.subr.mxu0 0.0
    %852 = vmatpush1.xpose.msra.mxu0 0.0
    %853 = vmatprep.subr.mxu0 0.0
    %854 = vmatpush1.xpose.msra.mxu0 0.0
    %855 = vmatprep.subr.mxu0 0.0
    %856 = vmatpush1.xpose.msra.mxu0 0.0
    %857 = vmatprep.subr.mxu0 0.0
    %858 = vmatpush1.xpose.msra.mxu0 0.0
    %859 = vmatprep.subr.mxu0 0.0
    %860 = vmatpush1.xpose.msra.mxu0 0.0
    %861 = vmatprep.subr.mxu0 0.0
    %862 = vmatpush1.xpose.msra.mxu0 0.0
    %863 = vmatprep.subr.mxu0 0.0
    %864 = vmatpush1.xpose.msra.mxu0 0.0
    %865 = vmatprep.subr.mxu0 0.0
    %866 = vmatpush1.xpose.msra.mxu0 0.0
    %867 = vmatprep.subr.mxu0 0.0
    %868 = vmatpush1.xpose.msra.mxu0 0.0
    %869 = vmatprep.subr.mxu0 0.0
    %870 = vmatpush1.xpose.msra.mxu0 0.0
    %871 = vmatprep.subr.mxu0 0.0
    %872 = vmatpush1.xpose.msra.mxu0 0.0
    %873 = vmatprep.subr.mxu0 0.0
    %874 = vmatpush1.xpose.msra.mxu0 0.0
    %875 = vmatprep.mubr.f32.mxu0 0.0
    %876 = vmatmul.mubr.f32.gmra.mrb[0].mxu0 %v803
    %v877 = vpop.f32.mrb[0].mxu0
    %v878 = vadd.f32 0.0, %v877
    %v879 = vpop.f32.mrb[0].mxu0
    %880 = vmatprep.mubr.f32.mxu0 0.0
    %881 = vmatmul.mubr.f32.gmra.mrb[0].mxu0 %v805
    %v882 = vpop.f32.mrb[0].mxu0
    %v883 = vadd.f32 0.0, %v882
    %v884 = vpop.f32.mrb[0].mxu0
    %885 = vdwg.mxu0
    %v886 = vmul.f32 %v878, 0.25
    %v887 = vmul.f32 %v883, 0.25
    %v888 = vadd.f32 %v886, %v594
    %v889 = vadd.f32 %v887, %v595
    %v890 = vsel %vm602, %v888, -inf
    %891 = vmax.xlane.f32.xlu0 %v890
    %v892 = vpop.xlane.xlu0 %891
    %v893 = vsel %vm602, %v889, -inf
    %894 = vmax.xlane.f32.xlu0 %v893
    %v895 = vpop.xlane.xlu0 %894
    %v896 = vsub.f32 %v888, %v892
    %v897 = vsub.f32 %v889, %v895
    %v898 = vmul.f32 %v896, 1.442695
    %v899 = vpow.pop %v898
    %v900 = vmul.f32 %v897, 1.442695
    %v901 = vpow.pop %v900
    %v902 = vsel %vm602, %v899, 0.0
    %903 = vadd.xlane.f32.xlu0 %v902
    %v904 = vpop.xlane.xlu0 %903
    %v905 = vsel %vm602, %v901, 0.0
    %906 = vadd.xlane.f32.xlu0 %v905
    %v907 = vpop.xlane.xlu0 %906
    %v908 = vrcp.pop %v904
    %v909 = vrcp.pop %v907
    %v910 = vmul.f32 %v899, %v908
    %v911 = vmul.f32 %v901, %v909
    %914 = vrot.lane.b32.xlu0 %v315, 112
    %v915 = vpop.permute.xlu0 %914
    %916 = vrot.lane.b32.xlu0 %v320, 112
    %v917 = vpop.permute.xlu0 %916
    %v921 = vsel %vm602, %v910, 0
    %v924 = vsel %vm602, %v911, 0
    %926 = vmatprep.subr.mxu0 0.0
    %927 = vmatpush1.msra.mxu0 %v915
    %928 = vmatprep.subr.mxu0 0.0
    %929 = vmatpush1.msra.mxu0 %v917
    %930 = vmatprep.subr.mxu0 0.0
    %931 = vmatpush1.msra.mxu0 0.0
    %932 = vmatprep.subr.mxu0 0.0
    %933 = vmatpush1.msra.mxu0 0.0
    %934 = vmatprep.subr.mxu0 0.0
    %935 = vmatpush1.msra.mxu0 0.0
    %936 = vmatprep.subr.mxu0 0.0
    %937 = vmatpush1.msra.mxu0 0.0
    %938 = vmatprep.subr.mxu0 0.0
    %939 = vmatpush1.msra.mxu0 0.0
    %940 = vmatprep.subr.mxu0 0.0
    %941 = vmatpush1.msra.mxu0 0.0
    %942 = vmatprep.subr.mxu0 0.0
    %943 = vmatpush1.msra.mxu0 0.0
    %944 = vmatprep.subr.mxu0 0.0
    %945 = vmatpush1.msra.mxu0 0.0
    %946 = vmatprep.subr.mxu0 0.0
    %947 = vmatpush1.msra.mxu0 0.0
    %948 = vmatprep.subr.mxu0 0.0
    %949 = vmatpush1.msra.mxu0 0.0
    %950 = vmatprep.subr.mxu0 0.0
    %951 = vmatpush1.msra.mxu0 0.0
    %952 = vmatprep.subr.mxu0 0.0
    %953 = vmatpush1.msra.mxu0 0.0
    %954 = vmatprep.subr.mxu0 0.0
    %955 = vmatpush1.msra.mxu0 0.0
    %956 = vmatprep.subr.mxu0 0.0
    %957 = vmatpush1.msra.mxu0 0.0
    %958 = vmatprep.subr.mxu0 0.0
    %959 = vmatpush1.msra.mxu0 0.0
    %960 = vmatprep.subr.mxu0 0.0
    %961 = vmatpush1.msra.mxu0 0.0
    %962 = vmatprep.subr.mxu0 0.0
    %963 = vmatpush1.msra.mxu0 0.0
    %964 = vmatprep.subr.mxu0 0.0
    %965 = vmatpush1.msra.mxu0 0.0
    %966 = vmatprep.subr.mxu0 0.0
    %967 = vmatpush1.msra.mxu0 0.0
    %968 = vmatprep.subr.mxu0 0.0
    %969 = vmatpush1.msra.mxu0 0.0
    %970 = vmatprep.subr.mxu0 0.0
    %971 = vmatpush1.msra.mxu0 0.0
    %972 = vmatprep.subr.mxu0 0.0
    %973 = vmatpush1.msra.mxu0 0.0
    %974 = vmatprep.subr.mxu0 0.0
    %975 = vmatpush1.msra.mxu0 0.0
    %976 = vmatprep.subr.mxu0 0.0
    %977 = vmatpush1.msra.mxu0 0.0
    %978 = vmatprep.subr.mxu0 0.0
    %979 = vmatpush1.msra.mxu0 0.0
    %980 = vmatprep.subr.mxu0 0.0
    %981 = vmatpush1.msra.mxu0 0.0
    %982 = vmatprep.subr.mxu0 0.0
    %983 = vmatpush1.msra.mxu0 0.0
    %984 = vmatprep.subr.mxu0 0.0
    %985 = vmatpush1.msra.mxu0 0.0
    %986 = vmatprep.subr.mxu0 0.0
    %987 = vmatpush1.msra.mxu0 0.0
    %988 = vmatprep.subr.mxu0 0.0
    %989 = vmatpush1.msra.mxu0 0.0
    %990 = vmatprep.mubr.f32.mxu0 0.0
    %991 = vmatmul.mubr.f32.gmra.mrb[0].mxu0 %v921
    %v992 = vpop.f32.mrb[0].mxu0
    %v993 = vadd.f32 0.0, %v992
    %v994 = vpop.f32.mrb[0].mxu0
    %995 = vmatprep.mubr.f32.mxu0 0.0
    %996 = vmatmul.mubr.f32.gmra.mrb[0].mxu0 %v924
    %v997 = vpop.f32.mrb[0].mxu0
    %v998 = vadd.f32 0.0, %v997
    %v999 = vpop.f32.mrb[0].mxu0
    %1000 = vdwg.mxu0
    %v1001 = vld [vmem:[#allocation5 + $0x10] sm:$0xff]
    %v1002 = vld [vmem:[#allocation5 + $0x18] sm:$0xff]
    %v1004 = vsel %vm602, %v993, 0
    %v1007 = vsel %vm602, %v998, 0
    %1009 = vmatprep.subr.mxu0 0.0
    %1010 = vmatpush1.msra.mxu0 %v1001
    %1011 = vmatprep.subr.mxu0 0.0
    %1012 = vmatpush1.msra.mxu0 %v1002
    %1013 = vmatprep.subr.mxu0 0.0
    %1014 = vmatpush1.msra.mxu0 0.0
    %1015 = vmatprep.subr.mxu0 0.0
    %1016 = vmatpush1.msra.mxu0 0.0
    %1017 = vmatprep.subr.mxu0 0.0
    %1018 = vmatpush1.msra.mxu0 0.0
    %1019 = vmatprep.subr.mxu0 0.0
    %1020 = vmatpush1.msra.mxu0 0.0
    %1021 = vmatprep.subr.mxu0 0.0
    %1022 = vmatpush1.msra.mxu0 0.0
    %1023 = vmatprep.subr.mxu0 0.0
    %1024 = vmatpush1.msra.mxu0 0.0
    %1025 = vmatprep.subr.mxu0 0.0
    %1026 = vmatpush1.msra.mxu0 0.0
    %1027 = vmatprep.subr.mxu0 0.0
    %1028 = vmatpush1.msra.mxu0 0.0
    %1029 = vmatprep.subr.mxu0 0.0
    %1030 = vmatpush1.msra.mxu0 0.0
    %1031 = vmatprep.subr.mxu0 0.0
    %1032 = vmatpush1.msra.mxu0 0.0
    %1033 = vmatprep.subr.mxu0 0.0
    %1034 = vmatpush1.msra.mxu0 0.0
    %1035 = vmatprep.subr.mxu0 0.0
    %1036 = vmatpush1.msra.mxu0 0.0
    %1037 = vmatprep.subr.mxu0 0.0
    %1038 = vmatpush1.msra.mxu0 0.0
    %1039 = vmatprep.subr.mxu0 0.0
    %1040 = vmatpush1.msra.mxu0 0.0
    %1041 = vmatprep.subr.mxu0 0.0
    %1042 = vmatpush1.msra.mxu0 0.0
    %1043 = vmatprep.subr.mxu0 0.0
    %1044 = vmatpush1.msra.mxu0 0.0
    %1045 = vmatprep.subr.mxu0 0.0
    %1046 = vmatpush1.msra.mxu0 0.0
    %1047 = vmatprep.subr.mxu0 0.0
    %1048 = vmatpush1.msra.mxu0 0.0
    %1049 = vmatprep.subr.mxu0 0.0
    %1050 = vmatpush1.msra.mxu0 0.0
    %1051 = vmatprep.subr.mxu0 0.0
    %1052 = vmatpush1.msra.mxu0 0.0
    %1053 = vmatprep.subr.mxu0 0.0
    %1054 = vmatpush1.msra.mxu0 0.0
    %1055 = vmatprep.subr.mxu0 0.0
    %1056 = vmatpush1.msra.mxu0 0.0
    %1057 = vmatprep.subr.mxu0 0.0
    %1058 = vmatpush1.msra.mxu0 0.0
    %1059 = vmatprep.subr.mxu0 0.0
    %1060 = vmatpush1.msra.mxu0 0.0
    %1061 = vmatprep.subr.mxu0 0.0
    %1062 = vmatpush1.msra.mxu0 0.0
    %1063 = vmatprep.subr.mxu0 0.0
    %1064 = vmatpush1.msra.mxu0 0.0
    %1065 = vmatprep.subr.mxu0 0.0
    %1066 = vmatpush1.msra.mxu0 0.0
    %1067 = vmatprep.subr.mxu0 0.0
    %1068 = vmatpush1.msra.mxu0 0.0
    %1069 = vmatprep.subr.mxu0 0.0
    %1070 = vmatpush1.msra.mxu0 0.0
    %1071 = vmatprep.subr.mxu0 0.0
    %1072 = vmatpush1.msra.mxu0 0.0
    %1073 = vmatprep.mubr.f32.mxu0 0.0
    %1074 = vmatmul.mubr.f32.gmra.mrb[0].mxu0 %v1004
    %v1075 = vpop.f32.mrb[0].mxu0
    %v1076 = vadd.f32 0.0, %v1075
    %v1077 = vpop.f32.mrb[0].mxu0
    %1078 = vmatprep.mubr.f32.mxu0 0.0
    %1079 = vmatmul.mubr.f32.gmra.mrb[0].mxu0 %v1007
    %v1080 = vpop.f32.mrb[0].mxu0
    %v1081 = vadd.f32 0.0, %v1080
    %v1082 = vpop.f32.mrb[0].mxu0
    %1083 = vdwg.mxu0
    %v1085 = vsel %vm602, %v785, 0
    %v1088 = vsel %vm602, %v790, 0
    %1090 = vmatprep.subr.mxu0 0.0
    %1091 = vmatpush1.msra.mxu0 %v793
    %1092 = vmatprep.subr.mxu0 0.0
    %1093 = vmatpush1.msra.mxu0 %v794
    %1094 = vmatprep.subr.mxu0 0.0
    %1095 = vmatpush1.msra.mxu0 0.0
    %1096 = vmatprep.subr.mxu0 0.0
    %1097 = vmatpush1.msra.mxu0 0.0
    %1098 = vmatprep.subr.mxu0 0.0
    %1099 = vmatpush1.msra.mxu0 0.0
    %1100 = vmatprep.subr.mxu0 0.0
    %1101 = vmatpush1.msra.mxu0 0.0
    %1102 = vmatprep.subr.mxu0 0.0
    %1103 = vmatpush1.msra.mxu0 0.0
    %1104 = vmatprep.subr.mxu0 0.0
    %1105 = vmatpush1.msra.mxu0 0.0
    %1106 = vmatprep.subr.mxu0 0.0
    %1107 = vmatpush1.msra.mxu0 0.0
    %1108 = vmatprep.subr.mxu0 0.0
    %1109 = vmatpush1.msra.mxu0 0.0
    %1110 = vmatprep.subr.mxu0 0.0
    %1111 = vmatpush1.msra.mxu0 0.0
    %1112 = vmatprep.subr.mxu0 0.0
    %1113 = vmatpush1.msra.mxu0 0.0
    %1114 = vmatprep.subr.mxu0 0.0
    %1115 = vmatpush1.msra.mxu0 0.0
    %1116 = vmatprep.subr.mxu0 0.0
    %1117 = vmatpush1.msra.mxu0 0.0
    %1118 = vmatprep.subr.mxu0 0.0
    %1119 = vmatpush1.msra.mxu0 0.0
    %1120 = vmatprep.subr.mxu0 0.0
    %1121 = vmatpush1.msra.mxu0 0.0
    %1122 = vmatprep.subr.mxu0 0.0
    %1123 = vmatpush1.msra.mxu0 0.0
    %1124 = vmatprep.subr.mxu0 0.0
    %1125 = vmatpush1.msra.mxu0 0.0
    %1126 = vmatprep.subr.mxu0 0.0
    %1127 = vmatpush1.msra.mxu0 0.0
    %1128 = vmatprep.subr.mxu0 0.0
    %1129 = vmatpush1.msra.mxu0 0.0
    %1130 = vmatprep.subr.mxu0 0.0
    %1131 = vmatpush1.msra.mxu0 0.0
    %1132 = vmatprep.subr.mxu0 0.0
    %1133 = vmatpush1.msra.mxu0 0.0
    %1134 = vmatprep.subr.mxu0 0.0
    %1135 = vmatpush1.msra.mxu0 0.0
    %1136 = vmatprep.subr.mxu0 0.0
    %1137 = vmatpush1.msra.mxu0 0.0
    %1138 = vmatprep.subr.mxu0 0.0
    %1139 = vmatpush1.msra.mxu0 0.0
    %1140 = vmatprep.subr.mxu0 0.0
    %1141 = vmatpush1.msra.mxu0 0.0
    %1142 = vmatprep.subr.mxu0 0.0
    %1143 = vmatpush1.msra.mxu0 0.0
    %1144 = vmatprep.subr.mxu0 0.0
    %1145 = vmatpush1.msra.mxu0 0.0
    %1146 = vmatprep.subr.mxu0 0.0
    %1147 = vmatpush1.msra.mxu0 0.0
    %1148 = vmatprep.subr.mxu0 0.0
    %1149 = vmatpush1.msra.mxu0 0.0
    %1150 = vmatprep.subr.mxu0 0.0
    %1151 = vmatpush1.msra.mxu0 0.0
    %1152 = vmatprep.subr.mxu0 0.0
    %1153 = vmatpush1.msra.mxu0 0.0
    %1154 = vmatprep.mubr.f32.mxu0 0.0
    %1155 = vmatmul.mubr.f32.gmra.mrb[0].mxu0 %v1085
    %v1156 = vpop.f32.mrb[0].mxu0
    %v1157 = vadd.f32 %v1076, %v1156
    %v1158 = vpop.f32.mrb[0].mxu0
    %1159 = vmatprep.mubr.f32.mxu0 0.0
    %1160 = vmatmul.mubr.f32.gmra.mrb[0].mxu0 %v1088
    %v1161 = vpop.f32.mrb[0].mxu0
    %v1162 = vadd.f32 %v1081, %v1161
    %v1163 = vpop.f32.mrb[0].mxu0
    %1164 = vdwg.mxu0
    %1165 = vrot.lane.b32.xlu0 %v578, 96
    %v1166 = vpop.permute.xlu0 %1165
    %1167 = vrot.lane.b32.xlu0 %v579, 96
    %v1168 = vpop.permute.xlu0 %1167
    %1169 = vrot.lane.b32.xlu0 %v578, 32
    %v1170 = vpop.permute.xlu0 %1169
    %1171 = vrot.lane.b32.xlu0 %v579, 32
    %v1172 = vpop.permute.xlu0 %1171
    %v1173 = vsel %vm602, %v1166, 0
    %v1175 = vsel %vm602, %v1168, 0
    %v1177 = vsel %vm602, %v1170, 0
    %v1179 = vsel %vm602, %v1172, 0
    %1181 = vmatprep.subr.mxu0 0.0
    %1182 = vmatpush1.xpose.msra.mxu0 %v1177
    %1183 = vmatprep.subr.mxu0 0.0
    %1184 = vmatpush1.xpose.msra.mxu0 %v1179
    %1185 = vmatprep.subr.mxu0 0.0
    %1186 = vmatpush1.xpose.msra.mxu0 0.0
    %1187 = vmatprep.subr.mxu0 0.0
    %1188 = vmatpush1.xpose.msra.mxu0 0.0
    %1189 = vmatprep.subr.mxu0 0.0
    %1190 = vmatpush1.xpose.msra.mxu0 0.0
    %1191 = vmatprep.subr.mxu0 0.0
    %1192 = vmatpush1.xpose.msra.mxu0 0.0
    %1193 = vmatprep.subr.mxu0 0.0
    %1194 = vmatpush1.xpose.msra.mxu0 0.0
    %1195 = vmatprep.subr.mxu0 0.0
    %1196 = vmatpush1.xpose.msra.mxu0 0.0
    %1197 = vmatprep.subr.mxu0 0.0
    %1198 = vmatpush1.xpose.msra.mxu0 0.0
    %1199 = vmatprep.subr.mxu0 0.0
    %1200 = vmatpush1.xpose.msra.mxu0 0.0
    %1201 = vmatprep.subr.mxu0 0.0
    %1202 = vmatpush1.xpose.msra.mxu0 0.0
    %1203 = vmatprep.subr.mxu0 0.0
    %1204 = vmatpush1.xpose.msra.mxu0 0.0
    %1205 = vmatprep.subr.mxu0 0.0
    %1206 = vmatpush1.xpose.msra.mxu0 0.0
    %1207 = vmatprep.subr.mxu0 0.0
    %1208 = vmatpush1.xpose.msra.mxu0 0.0
    %1209 = vmatprep.subr.mxu0 0.0
    %1210 = vmatpush1.xpose.msra.mxu0 0.0
    %1211 = vmatprep.subr.mxu0 0.0
    %1212 = vmatpush1.xpose.msra.mxu0 0.0
    %1213 = vmatprep.subr.mxu0 0.0
    %1214 = vmatpush1.xpose.msra.mxu0 0.0
    %1215 = vmatprep.subr.mxu0 0.0
    %1216 = vmatpush1.xpose.msra.mxu0 0.0
    %1217 = vmatprep.subr.mxu0 0.0
    %1218 = vmatpush1.xpose.msra.mxu0 0.0
    %1219 = vmatprep.subr.mxu0 0.0
    %1220 = vmatpush1.xpose.msra.mxu0 0.0
    %1221 = vmatprep.subr.mxu0 0.0
    %1222 = vmatpush1.xpose.msra.mxu0 0.0
    %1223 = vmatprep.subr.mxu0 0.0
    %1224 = vmatpush1.xpose.msra.mxu0 0.0
    %1225 = vmatprep.subr.mxu0 0.0
    %1226 = vmatpush1.xpose.msra.mxu0 0.0
    %1227 = vmatprep.subr.mxu0 0.0
    %1228 = vmatpush1.xpose.msra.mxu0 0.0
    %1229 = vmatprep.subr.mxu0 0.0
    %1230 = vmatpush1.xpose.msra.mxu0 0.0
    %1231 = vmatprep.subr.mxu0 0.0
    %1232 = vmatpush1.xpose.msra.mxu0 0.0
    %1233 = vmatprep.subr.mxu0 0.0
    %1234 = vmatpush1.xpose.msra.mxu0 0.0
    %1235 = vmatprep.subr.mxu0 0.0
    %1236 = vmatpush1.xpose.msra.mxu0 0.0
    %1237 = vmatprep.subr.mxu0 0.0
    %1238 = vmatpush1.xpose.msra.mxu0 0.0
    %1239 = vmatprep.subr.mxu0 0.0
    %1240 = vmatpush1.xpose.msra.mxu0 0.0
    %1241 = vmatprep.subr.mxu0 0.0
    %1242 = vmatpush1.xpose.msra.mxu0 0.0
    %1243 = vmatprep.subr.mxu0 0.0
    %1244 = vmatpush1.xpose.msra.mxu0 0.0
    %1245 = vmatprep.mubr.f32.mxu0 0.0
    %1246 = vmatmul.mubr.f32.gmra.mrb[0].mxu0 %v1173
    %v1247 = vpop.f32.mrb[0].mxu0
    %v1248 = vadd.f32 0.0, %v1247
    %v1249 = vpop.f32.mrb[0].mxu0
    %1250 = vmatprep.mubr.f32.mxu0 0.0
    %1251 = vmatmul.mubr.f32.gmra.mrb[0].mxu0 %v1175
    %v1252 = vpop.f32.mrb[0].mxu0
    %v1253 = vadd.f32 0.0, %v1252
    %v1254 = vpop.f32.mrb[0].mxu0
    %1255 = vdwg.mxu0
    %v1256 = vmul.f32 %v1248, 0.25
    %v1257 = vmul.f32 %v1253, 0.25
    %v1258 = vadd.f32 %v1256, %v594
    %v1259 = vadd.f32 %v1257, %v595
    %v1260 = vsel %vm602, %v1258, -inf
    %1261 = vmax.xlane.f32.xlu0 %v1260
    %v1262 = vpop.xlane.xlu0 %1261
    %v1263 = vsel %vm602, %v1259, -inf
    %1264 = vmax.xlane.f32.xlu0 %v1263
    %v1265 = vpop.xlane.xlu0 %1264
    %v1266 = vsub.f32 %v1258, %v1262
    %v1267 = vsub.f32 %v1259, %v1265
    %v1268 = vmul.f32 %v1266, 1.442695
    %v1269 = vpow.pop %v1268
    %v1270 = vmul.f32 %v1267, 1.442695
    %v1271 = vpow.pop %v1270
    %v1272 = vsel %vm602, %v1269, 0.0
    %1273 = vadd.xlane.f32.xlu0 %v1272
    %v1274 = vpop.xlane.xlu0 %1273
    %v1275 = vsel %vm602, %v1271, 0.0
    %1276 = vadd.xlane.f32.xlu0 %v1275
    %v1277 = vpop.xlane.xlu0 %1276
    %v1278 = vrcp.pop %v1274
    %v1279 = vrcp.pop %v1277
    %v1280 = vmul.f32 %v1269, %v1278
    %v1281 = vmul.f32 %v1271, %v1279
    %1282 = vrot.lane.b32.xlu0 %v315, 96
    %v1283 = vpop.permute.xlu0 %1282
    %1284 = vrot.lane.b32.xlu0 %v320, 96
    %v1285 = vpop.permute.xlu0 %1284
    %v1289 = vsel %vm602, %v1280, 0
    %v1292 = vsel %vm602, %v1281, 0
    %1294 = vmatprep.subr.mxu0 0.0
    %1295 = vmatpush1.msra.mxu0 %v1283
    %1296 = vmatprep.subr.mxu0 0.0
    %1297 = vmatpush1.msra.mxu0 %v1285
    %1298 = vmatprep.subr.mxu0 0.0
    %1299 = vmatpush1.msra.mxu0 0.0
    %1300 = vmatprep.subr.mxu0 0.0
    %1301 = vmatpush1.msra.mxu0 0.0
    %1302 = vmatprep.subr.mxu0 0.0
    %1303 = vmatpush1.msra.mxu0 0.0
    %1304 = vmatprep.subr.mxu0 0.0
    %1305 = vmatpush1.msra.mxu0 0.0
    %1306 = vmatprep.subr.mxu0 0.0
    %1307 = vmatpush1.msra.mxu0 0.0
    %1308 = vmatprep.subr.mxu0 0.0
    %1309 = vmatpush1.msra.mxu0 0.0
    %1310 = vmatprep.subr.mxu0 0.0
    %1311 = vmatpush1.msra.mxu0 0.0
    %1312 = vmatprep.subr.mxu0 0.0
    %1313 = vmatpush1.msra.mxu0 0.0
    %1314 = vmatprep.subr.mxu0 0.0
    %1315 = vmatpush1.msra.mxu0 0.0
    %1316 = vmatprep.subr.mxu0 0.0
    %1317 = vmatpush1.msra.mxu0 0.0
    %1318 = vmatprep.subr.mxu0 0.0
    %1319 = vmatpush1.msra.mxu0 0.0
    %1320 = vmatprep.subr.mxu0 0.0
    %1321 = vmatpush1.msra.mxu0 0.0
    %1322 = vmatprep.subr.mxu0 0.0
    %1323 = vmatpush1.msra.mxu0 0.0
    %1324 = vmatprep.subr.mxu0 0.0
    %1325 = vmatpush1.msra.mxu0 0.0
    %1326 = vmatprep.subr.mxu0 0.0
    %1327 = vmatpush1.msra.mxu0 0.0
    %1328 = vmatprep.subr.mxu0 0.0
    %1329 = vmatpush1.msra.mxu0 0.0
    %1330 = vmatprep.subr.mxu0 0.0
    %1331 = vmatpush1.msra.mxu0 0.0
    %1332 = vmatprep.subr.mxu0 0.0
    %1333 = vmatpush1.msra.mxu0 0.0
    %1334 = vmatprep.subr.mxu0 0.0
    %1335 = vmatpush1.msra.mxu0 0.0
    %1336 = vmatprep.subr.mxu0 0.0
    %1337 = vmatpush1.msra.mxu0 0.0
    %1338 = vmatprep.subr.mxu0 0.0
    %1339 = vmatpush1.msra.mxu0 0.0
    %1340 = vmatprep.subr.mxu0 0.0
    %1341 = vmatpush1.msra.mxu0 0.0
    %1342 = vmatprep.subr.mxu0 0.0
    %1343 = vmatpush1.msra.mxu0 0.0
    %1344 = vmatprep.subr.mxu0 0.0
    %1345 = vmatpush1.msra.mxu0 0.0
    %1346 = vmatprep.subr.mxu0 0.0
    %1347 = vmatpush1.msra.mxu0 0.0
    %1348 = vmatprep.subr.mxu0 0.0
    %1349 = vmatpush1.msra.mxu0 0.0
    %1350 = vmatprep.subr.mxu0 0.0
    %1351 = vmatpush1.msra.mxu0 0.0
    %1352 = vmatprep.subr.mxu0 0.0
    %1353 = vmatpush1.msra.mxu0 0.0
    %1354 = vmatprep.subr.mxu0 0.0
    %1355 = vmatpush1.msra.mxu0 0.0
    %1356 = vmatprep.subr.mxu0 0.0
    %1357 = vmatpush1.msra.mxu0 0.0
    %1358 = vmatprep.mubr.f32.mxu0 0.0
    %1359 = vmatmul.mubr.f32.gmra.mrb[0].mxu0 %v1289
    %v1360 = vpop.f32.mrb[0].mxu0
    %v1361 = vadd.f32 0.0, %v1360
    %v1362 = vpop.f32.mrb[0].mxu0
    %1363 = vmatprep.mubr.f32.mxu0 0.0
    %1364 = vmatmul.mubr.f32.gmra.mrb[0].mxu0 %v1292
    %v1365 = vpop.f32.mrb[0].mxu0
    %v1366 = vadd.f32 0.0, %v1365
    %v1367 = vpop.f32.mrb[0].mxu0
    %1368 = vdwg.mxu0
    %v1369 = vld [vmem:[#allocation5 + $0x20] sm:$0xff]
    %v1370 = vld [vmem:[#allocation5 + $0x28] sm:$0xff]
    %v1372 = vsel %vm602, %v1361, 0
    %v1375 = vsel %vm602, %v1366, 0
    %1377 = vmatprep.subr.mxu0 0.0
    %1378 = vmatpush1.msra.mxu0 %v1369
    %1379 = vmatprep.subr.mxu0 0.0
    %1380 = vmatpush1.msra.mxu0 %v1370
    %1381 = vmatprep.subr.mxu0 0.0
    %1382 = vmatpush1.msra.mxu0 0.0
    %1383 = vmatprep.subr.mxu0 0.0
    %1384 = vmatpush1.msra.mxu0 0.0
    %1385 = vmatprep.subr.mxu0 0.0
    %1386 = vmatpush1.msra.mxu0 0.0
    %1387 = vmatprep.subr.mxu0 0.0
    %1388 = vmatpush1.msra.mxu0 0.0
    %1389 = vmatprep.subr.mxu0 0.0
    %1390 = vmatpush1.msra.mxu0 0.0
    %1391 = vmatprep.subr.mxu0 0.0
    %1392 = vmatpush1.msra.mxu0 0.0
    %1393 = vmatprep.subr.mxu0 0.0
    %1394 = vmatpush1.msra.mxu0 0.0
    %1395 = vmatprep.subr.mxu0 0.0
    %1396 = vmatpush1.msra.mxu0 0.0
    %1397 = vmatprep.subr.mxu0 0.0
    %1398 = vmatpush1.msra.mxu0 0.0
    %1399 = vmatprep.subr.mxu0 0.0
    %1400 = vmatpush1.msra.mxu0 0.0
    %1401 = vmatprep.subr.mxu0 0.0
    %1402 = vmatpush1.msra.mxu0 0.0
    %1403 = vmatprep.subr.mxu0 0.0
    %1404 = vmatpush1.msra.mxu0 0.0
    %1405 = vmatprep.subr.mxu0 0.0
    %1406 = vmatpush1.msra.mxu0 0.0
    %1407 = vmatprep.subr.mxu0 0.0
    %1408 = vmatpush1.msra.mxu0 0.0
    %1409 = vmatprep.subr.mxu0 0.0
    %1410 = vmatpush1.msra.mxu0 0.0
    %1411 = vmatprep.subr.mxu0 0.0
    %1412 = vmatpush1.msra.mxu0 0.0
    %1413 = vmatprep.subr.mxu0 0.0
    %1414 = vmatpush1.msra.mxu0 0.0
    %1415 = vmatprep.subr.mxu0 0.0
    %1416 = vmatpush1.msra.mxu0 0.0
    %1417 = vmatprep.subr.mxu0 0.0
    %1418 = vmatpush1.msra.mxu0 0.0
    %1419 = vmatprep.subr.mxu0 0.0
    %1420 = vmatpush1.msra.mxu0 0.0
    %1421 = vmatprep.subr.mxu0 0.0
    %1422 = vmatpush1.msra.mxu0 0.0
    %1423 = vmatprep.subr.mxu0 0.0
    %1424 = vmatpush1.msra.mxu0 0.0
    %1425 = vmatprep.subr.mxu0 0.0
    %1426 = vmatpush1.msra.mxu0 0.0
    %1427 = vmatprep.subr.mxu0 0.0
    %1428 = vmatpush1.msra.mxu0 0.0
    %1429 = vmatprep.subr.mxu0 0.0
    %1430 = vmatpush1.msra.mxu0 0.0
    %1431 = vmatprep.subr.mxu0 0.0
    %1432 = vmatpush1.msra.mxu0 0.0
    %1433 = vmatprep.subr.mxu0 0.0
    %1434 = vmatpush1.msra.mxu0 0.0
    %1435 = vmatprep.subr.mxu0 0.0
    %1436 = vmatpush1.msra.mxu0 0.0
    %1437 = vmatprep.subr.mxu0 0.0
    %1438 = vmatpush1.msra.mxu0 0.0
    %1439 = vmatprep.subr.mxu0 0.0
    %1440 = vmatpush1.msra.mxu0 0.0
    %1441 = vmatprep.mubr.f32.mxu0 0.0
    %1442 = vmatmul.mubr.f32.gmra.mrb[0].mxu0 %v1372
    %v1443 = vpop.f32.mrb[0].mxu0
    %v1444 = vadd.f32 0.0, %v1443
    %v1445 = vpop.f32.mrb[0].mxu0
    %1446 = vmatprep.mubr.f32.mxu0 0.0
    %1447 = vmatmul.mubr.f32.gmra.mrb[0].mxu0 %v1375
    %v1448 = vpop.f32.mrb[0].mxu0
    %v1449 = vadd.f32 0.0, %v1448
    %v1450 = vpop.f32.mrb[0].mxu0
    %1451 = vdwg.mxu0
    %v1452 = vadd.f32 %v1157, %v1444
    %v1453 = vadd.f32 %v1162, %v1449
    %1454 = vrot.lane.b32.xlu0 %v578, 80
    %v1455 = vpop.permute.xlu0 %1454
    %1456 = vrot.lane.b32.xlu0 %v579, 80
    %v1457 = vpop.permute.xlu0 %1456
    %1458 = vrot.lane.b32.xlu0 %v578, 16
    %v1459 = vpop.permute.xlu0 %1458
    %1460 = vrot.lane.b32.xlu0 %v579, 16
    %v1461 = vpop.permute.xlu0 %1460
    %v1462 = vsel %vm602, %v1455, 0
    %v1464 = vsel %vm602, %v1457, 0
    %v1466 = vsel %vm602, %v1459, 0
    %v1468 = vsel %vm602, %v1461, 0
    %1470 = vmatprep.subr.mxu0 0.0
    %1471 = vmatpush1.xpose.msra.mxu0 %v1466
    %1472 = vmatprep.subr.mxu0 0.0
    %1473 = vmatpush1.xpose.msra.mxu0 %v1468
    %1474 = vmatprep.subr.mxu0 0.0
    %1475 = vmatpush1.xpose.msra.mxu0 0.0
    %1476 = vmatprep.subr.mxu0 0.0
    %1477 = vmatpush1.xpose.msra.mxu0 0.0
    %1478 = vmatprep.subr.mxu0 0.0
    %1479 = vmatpush1.xpose.msra.mxu0 0.0
    %1480 = vmatprep.subr.mxu0 0.0
    %1481 = vmatpush1.xpose.msra.mxu0 0.0
    %1482 = vmatprep.subr.mxu0 0.0
    %1483 = vmatpush1.xpose.msra.mxu0 0.0
    %1484 = vmatprep.subr.mxu0 0.0
    %1485 = vmatpush1.xpose.msra.mxu0 0.0
    %1486 = vmatprep.subr.mxu0 0.0
    %1487 = vmatpush1.xpose.msra.mxu0 0.0
    %1488 = vmatprep.subr.mxu0 0.0
    %1489 = vmatpush1.xpose.msra.mxu0 0.0
    %1490 = vmatprep.subr.mxu0 0.0
    %1491 = vmatpush1.xpose.msra.mxu0 0.0
    %1492 = vmatprep.subr.mxu0 0.0
    %1493 = vmatpush1.xpose.msra.mxu0 0.0
    %1494 = vmatprep.subr.mxu0 0.0
    %1495 = vmatpush1.xpose.msra.mxu0 0.0
    %1496 = vmatprep.subr.mxu0 0.0
    %1497 = vmatpush1.xpose.msra.mxu0 0.0
    %1498 = vmatprep.subr.mxu0 0.0
    %1499 = vmatpush1.xpose.msra.mxu0 0.0
    %1500 = vmatprep.subr.mxu0 0.0
    %1501 = vmatpush1.xpose.msra.mxu0 0.0
    %1502 = vmatprep.subr.mxu0 0.0
    %1503 = vmatpush1.xpose.msra.mxu0 0.0
    %1504 = vmatprep.subr.mxu0 0.0
    %1505 = vmatpush1.xpose.msra.mxu0 0.0
    %1506 = vmatprep.subr.mxu0 0.0
    %1507 = vmatpush1.xpose.msra.mxu0 0.0
    %1508 = vmatprep.subr.mxu0 0.0
    %1509 = vmatpush1.xpose.msra.mxu0 0.0
    %1510 = vmatprep.subr.mxu0 0.0
    %1511 = vmatpush1.xpose.msra.mxu0 0.0
    %1512 = vmatprep.subr.mxu0 0.0
    %1513 = vmatpush1.xpose.msra.mxu0 0.0
    %1514 = vmatprep.subr.mxu0 0.0
    %1515 = vmatpush1.xpose.msra.mxu0 0.0
    %1516 = vmatprep.subr.mxu0 0.0
    %1517 = vmatpush1.xpose.msra.mxu0 0.0
    %1518 = vmatprep.subr.mxu0 0.0
    %1519 = vmatpush1.xpose.msra.mxu0 0.0
    %1520 = vmatprep.subr.mxu0 0.0
    %1521 = vmatpush1.xpose.msra.mxu0 0.0
    %1522 = vmatprep.subr.mxu0 0.0
    %1523 = vmatpush1.xpose.msra.mxu0 0.0
    %1524 = vmatprep.subr.mxu0 0.0
    %1525 = vmatpush1.xpose.msra.mxu0 0.0
    %1526 = vmatprep.subr.mxu0 0.0
    %1527 = vmatpush1.xpose.msra.mxu0 0.0
    %1528 = vmatprep.subr.mxu0 0.0
    %1529 = vmatpush1.xpose.msra.mxu0 0.0
    %1530 = vmatprep.subr.mxu0 0.0
    %1531 = vmatpush1.xpose.msra.mxu0 0.0
    %1532 = vmatprep.subr.mxu0 0.0
    %1533 = vmatpush1.xpose.msra.mxu0 0.0
    %1534 = vmatprep.mubr.f32.mxu0 0.0
    %1535 = vmatmul.mubr.f32.gmra.mrb[0].mxu0 %v1462
    %v1536 = vpop.f32.mrb[0].mxu0
    %v1537 = vadd.f32 0.0, %v1536
    %v1538 = vpop.f32.mrb[0].mxu0
    %1539 = vmatprep.mubr.f32.mxu0 0.0
    %1540 = vmatmul.mubr.f32.gmra.mrb[0].mxu0 %v1464
    %v1541 = vpop.f32.mrb[0].mxu0
    %v1542 = vadd.f32 0.0, %v1541
    %v1543 = vpop.f32.mrb[0].mxu0
    %1544 = vdwg.mxu0
    %v1545 = vmul.f32 %v1537, 0.25
    %v1546 = vmul.f32 %v1542, 0.25
    %v1547 = vadd.f32 %v1545, %v594
    %v1548 = vadd.f32 %v1546, %v595
    %v1549 = vsel %vm602, %v1547, -inf
    %1550 = vmax.xlane.f32.xlu0 %v1549
    %v1551 = vpop.xlane.xlu0 %1550
    %v1552 = vsel %vm602, %v1548, -inf
    %1553 = vmax.xlane.f32.xlu0 %v1552
    %v1554 = vpop.xlane.xlu0 %1553
    %v1555 = vsub.f32 %v1547, %v1551
    %v1556 = vsub.f32 %v1548, %v1554
    %v1557 = vmul.f32 %v1555, 1.442695
    %v1558 = vpow.pop %v1557
    %v1559 = vmul.f32 %v1556, 1.442695
    %v1560 = vpow.pop %v1559
    %v1561 = vsel %vm602, %v1558, 0.0
    %1562 = vadd.xlane.f32.xlu0 %v1561
    %v1563 = vpop.xlane.xlu0 %1562
    %v1564 = vsel %vm602, %v1560, 0.0
    %1565 = vadd.xlane.f32.xlu0 %v1564
    %v1566 = vpop.xlane.xlu0 %1565
    %v1567 = vrcp.pop %v1563
    %v1568 = vrcp.pop %v1566
    %v1569 = vmul.f32 %v1558, %v1567
    %v1570 = vmul.f32 %v1560, %v1568
    %1571 = vrot.lane.b32.xlu0 %v315, 80
    %v1572 = vpop.permute.xlu0 %1571
    %1573 = vrot.lane.b32.xlu0 %v320, 80
    %v1574 = vpop.permute.xlu0 %1573
    %v1578 = vsel %vm602, %v1569, 0
    %v1581 = vsel %vm602, %v1570, 0
    %1583 = vmatprep.subr.mxu0 0.0
    %1584 = vmatpush1.msra.mxu0 %v1572
    %1585 = vmatprep.subr.mxu0 0.0
    %1586 = vmatpush1.msra.mxu0 %v1574
    %1587 = vmatprep.subr.mxu0 0.0
    %1588 = vmatpush1.msra.mxu0 0.0
    %1589 = vmatprep.subr.mxu0 0.0
    %1590 = vmatpush1.msra.mxu0 0.0
    %1591 = vmatprep.subr.mxu0 0.0
    %1592 = vmatpush1.msra.mxu0 0.0
    %1593 = vmatprep.subr.mxu0 0.0
    %1594 = vmatpush1.msra.mxu0 0.0
    %1595 = vmatprep.subr.mxu0 0.0
    %1596 = vmatpush1.msra.mxu0 0.0
    %1597 = vmatprep.subr.mxu0 0.0
    %1598 = vmatpush1.msra.mxu0 0.0
    %1599 = vmatprep.subr.mxu0 0.0
    %1600 = vmatpush1.msra.mxu0 0.0
    %1601 = vmatprep.subr.mxu0 0.0
    %1602 = vmatpush1.msra.mxu0 0.0
    %1603 = vmatprep.subr.mxu0 0.0
    %1604 = vmatpush1.msra.mxu0 0.0
    %1605 = vmatprep.subr.mxu0 0.0
    %1606 = vmatpush1.msra.mxu0 0.0
    %1607 = vmatprep.subr.mxu0 0.0
    %1608 = vmatpush1.msra.mxu0 0.0
    %1609 = vmatprep.subr.mxu0 0.0
    %1610 = vmatpush1.msra.mxu0 0.0
    %1611 = vmatprep.subr.mxu0 0.0
    %1612 = vmatpush1.msra.mxu0 0.0
    %1613 = vmatprep.subr.mxu0 0.0
    %1614 = vmatpush1.msra.mxu0 0.0
    %1615 = vmatprep.subr.mxu0 0.0
    %1616 = vmatpush1.msra.mxu0 0.0
    %1617 = vmatprep.subr.mxu0 0.0
    %1618 = vmatpush1.msra.mxu0 0.0
    %1619 = vmatprep.subr.mxu0 0.0
    %1620 = vmatpush1.msra.mxu0 0.0
    %1621 = vmatprep.subr.mxu0 0.0
    %1622 = vmatpush1.msra.mxu0 0.0
    %1623 = vmatprep.subr.mxu0 0.0
    %1624 = vmatpush1.msra.mxu0 0.0
    %1625 = vmatprep.subr.mxu0 0.0
    %1626 = vmatpush1.msra.mxu0 0.0
    %1627 = vmatprep.subr.mxu0 0.0
    %1628 = vmatpush1.msra.mxu0 0.0
    %1629 = vmatprep.subr.mxu0 0.0
    %1630 = vmatpush1.msra.mxu0 0.0
    %1631 = vmatprep.subr.mxu0 0.0
    %1632 = vmatpush1.msra.mxu0 0.0
    %1633 = vmatprep.subr.mxu0 0.0
    %1634 = vmatpush1.msra.mxu0 0.0
    %1635 = vmatprep.subr.mxu0 0.0
    %1636 = vmatpush1.msra.mxu0 0.0
    %1637 = vmatprep.subr.mxu0 0.0
    %1638 = vmatpush1.msra.mxu0 0.0
    %1639 = vmatprep.subr.mxu0 0.0
    %1640 = vmatpush1.msra.mxu0 0.0
    %1641 = vmatprep.subr.mxu0 0.0
    %1642 = vmatpush1.msra.mxu0 0.0
    %1643 = vmatprep.subr.mxu0 0.0
    %1644 = vmatpush1.msra.mxu0 0.0
    %1645 = vmatprep.subr.mxu0 0.0
    %1646 = vmatpush1.msra.mxu0 0.0
    %1647 = vmatprep.mubr.f32.mxu0 0.0
    %1648 = vmatmul.mubr.f32.gmra.mrb[0].mxu0 %v1578
    %v1649 = vpop.f32.mrb[0].mxu0
    %v1650 = vadd.f32 0.0, %v1649
    %v1651 = vpop.f32.mrb[0].mxu0
    %1652 = vmatprep.mubr.f32.mxu0 0.0
    %1653 = vmatmul.mubr.f32.gmra.mrb[0].mxu0 %v1581
    %v1654 = vpop.f32.mrb[0].mxu0
    %v1655 = vadd.f32 0.0, %v1654
    %v1656 = vpop.f32.mrb[0].mxu0
    %1657 = vdwg.mxu0
    %v1658 = vld [vmem:[#allocation5 + $0x30] sm:$0xff]
    %v1659 = vld [vmem:[#allocation5 + $0x38] sm:$0xff]
    %v1661 = vsel %vm602, %v1650, 0
    %v1664 = vsel %vm602, %v1655, 0
    %1666 = vmatprep.subr.mxu0 0.0
    %1667 = vmatpush1.msra.mxu0 %v1658
    %1668 = vmatprep.subr.mxu0 0.0
    %1669 = vmatpush1.msra.mxu0 %v1659
    %1670 = vmatprep.subr.mxu0 0.0
    %1671 = vmatpush1.msra.mxu0 0.0
    %1672 = vmatprep.subr.mxu0 0.0
    %1673 = vmatpush1.msra.mxu0 0.0
    %1674 = vmatprep.subr.mxu0 0.0
    %1675 = vmatpush1.msra.mxu0 0.0
    %1676 = vmatprep.subr.mxu0 0.0
    %1677 = vmatpush1.msra.mxu0 0.0
    %1678 = vmatprep.subr.mxu0 0.0
    %1679 = vmatpush1.msra.mxu0 0.0
    %1680 = vmatprep.subr.mxu0 0.0
    %1681 = vmatpush1.msra.mxu0 0.0
    %1682 = vmatprep.subr.mxu0 0.0
    %1683 = vmatpush1.msra.mxu0 0.0
    %1684 = vmatprep.subr.mxu0 0.0
    %1685 = vmatpush1.msra.mxu0 0.0
    %1686 = vmatprep.subr.mxu0 0.0
    %1687 = vmatpush1.msra.mxu0 0.0
    %1688 = vmatprep.subr.mxu0 0.0
    %1689 = vmatpush1.msra.mxu0 0.0
    %1690 = vmatprep.subr.mxu0 0.0
    %1691 = vmatpush1.msra.mxu0 0.0
    %1692 = vmatprep.subr.mxu0 0.0
    %1693 = vmatpush1.msra.mxu0 0.0
    %1694 = vmatprep.subr.mxu0 0.0
    %1695 = vmatpush1.msra.mxu0 0.0
    %1696 = vmatprep.subr.mxu0 0.0
    %1697 = vmatpush1.msra.mxu0 0.0
    %1698 = vmatprep.subr.mxu0 0.0
    %1699 = vmatpush1.msra.mxu0 0.0
    %1700 = vmatprep.subr.mxu0 0.0
    %1701 = vmatpush1.msra.mxu0 0.0
    %1702 = vmatprep.subr.mxu0 0.0
    %1703 = vmatpush1.msra.mxu0 0.0
    %1704 = vmatprep.subr.mxu0 0.0
    %1705 = vmatpush1.msra.mxu0 0.0
    %1706 = vmatprep.subr.mxu0 0.0
    %1707 = vmatpush1.msra.mxu0 0.0
    %1708 = vmatprep.subr.mxu0 0.0
    %1709 = vmatpush1.msra.mxu0 0.0
    %1710 = vmatprep.subr.mxu0 0.0
    %1711 = vmatpush1.msra.mxu0 0.0
    %1712 = vmatprep.subr.mxu0 0.0
    %1713 = vmatpush1.msra.mxu0 0.0
    %1714 = vmatprep.subr.mxu0 0.0
    %1715 = vmatpush1.msra.mxu0 0.0
    %1716 = vmatprep.subr.mxu0 0.0
    %1717 = vmatpush1.msra.mxu0 0.0
    %1718 = vmatprep.subr.mxu0 0.0
    %1719 = vmatpush1.msra.mxu0 0.0
    %1720 = vmatprep.subr.mxu0 0.0
    %1721 = vmatpush1.msra.mxu0 0.0
    %1722 = vmatprep.subr.mxu0 0.0
    %1723 = vmatpush1.msra.mxu0 0.0
    %1724 = vmatprep.subr.mxu0 0.0
    %1725 = vmatpush1.msra.mxu0 0.0
    %1726 = vmatprep.subr.mxu0 0.0
    %1727 = vmatpush1.msra.mxu0 0.0
    %1728 = vmatprep.subr.mxu0 0.0
    %1729 = vmatpush1.msra.mxu0 0.0
    %1730 = vmatprep.mubr.f32.mxu0 0.0
    %1731 = vmatmul.mubr.f32.gmra.mrb[0].mxu0 %v1661
    %v1732 = vpop.f32.mrb[0].mxu0
    %v1733 = vadd.f32 0.0, %v1732
    %v1734 = vpop.f32.mrb[0].mxu0
    %1735 = vmatprep.mubr.f32.mxu0 0.0
    %1736 = vmatmul.mubr.f32.gmra.mrb[0].mxu0 %v1664
    %v1737 = vpop.f32.mrb[0].mxu0
    %v1738 = vadd.f32 0.0, %v1737
    %v1739 = vpop.f32.mrb[0].mxu0
    %1740 = vdwg.mxu0
    %v1741 = vadd.f32 %v1452, %v1733
    %v1742 = vadd.f32 %v1453, %v1738
    %v1743 = vadd.f32 %v88, %v1741
    %v1744 = vadd.f32 %v89, %v1742
    %v1745 = vmul.f32 %v1743, %v1743
    %v1746 = vmul.f32 %v1744, %v1744
    %v1747 = vsel %vm129, %v1745, 0.0
    %1748 = vadd.xlane.f32.xlu0 %v1747
    %v1749 = vpop.xlane.xlu0 %1748
    %v1750 = vsel %vm129, %v1746, 0.0
    %1751 = vadd.xlane.f32.xlu0 %v1750
    %v1752 = vpop.xlane.xlu0 %1751
    %v1753 = vmul.f32 %v1749, %v136
    %v1754 = vmul.f32 %v1752, %v136
    %v1755 = vadd.f32 %v1753, 1e-05
    %v1756 = vadd.f32 %v1754, 1e-05
    %v1757 = vrsqrt.pop %v1755
    %v1758 = vrsqrt.pop %v1756
    %v1759 = vmul.f32 %v1743, %v1757
    %v1760 = vmul.f32 %v1744, %v1758
    %v1761 = vlaneseq
    %v1762 = vshrl.u32 %v1761, 7
    %v1763 = vsub.s32 3, %v1762
    %v1764 = vrot.slane %v90, %v1763
    %v1765 = vmul.f32 %v1759, %v1764
    %v1766 = vmul.f32 %v1760, %v1764
    %v1767 = vld [vmem:[%s4] sm:$0xff]
    %v1768 = vld [vmem:[%s4 + $0x8] sm:$0xff]
    %v1769 = vld [vmem:[%s4 + $0x10] sm:$0xff]
    %v1770 = vld [vmem:[%s4 + $0x18] sm:$0xff]
    %v1771 = vld [vmem:[%s4 + $0x20] sm:$0xff]
    %v1772 = vld [vmem:[%s4 + $0x28] sm:$0xff]
    %v1773 = vld [vmem:[%s4 + $0x30] sm:$0xff]
    %v1774 = vld [vmem:[%s4 + $0x38] sm:$0xff]
    %v1775 = vld [vmem:[%s4 + $0x40] sm:$0xff]
    %v1776 = vld [vmem:[%s4 + $0x48] sm:$0xff]
    %v1777 = vld [vmem:[%s4 + $0x50] sm:$0xff]
    %v1778 = vld [vmem:[%s4 + $0x58] sm:$0xff]
    %v1779 = vld [vmem:[%s4 + $0x60] sm:$0xff]
    %v1780 = vld [vmem:[%s4 + $0x68] sm:$0xff]
    %v1781 = vld [vmem:[%s4 + $0x70] sm:$0xff]
    %v1782 = vld [vmem:[%s4 + $0x78] sm:$0xff]
    %v1783 = vld [vmem:[%s4 + $0x80] sm:$0xff]
    %v1784 = vld [vmem:[%s4 + $0x88] sm:$0xff]
    %v1785 = vld [vmem:[%s4 + $0x90] sm:$0xff]
    %v1786 = vld [vmem:[%s4 + $0x98] sm:$0xff]
    %v1787 = vld [vmem:[%s4 + $0xa0] sm:$0xff]
    %v1788 = vld [vmem:[%s4 + $0xa8] sm:$0xff]
    %v1789 = vld [vmem:[%s4 + $0xb0] sm:$0xff]
    %v1790 = vld [vmem:[%s4 + $0xb8] sm:$0xff]
    %v1791 = vld [vmem:[%s4 + $0xc0] sm:$0xff]
    %v1792 = vld [vmem:[%s4 + $0xc8] sm:$0xff]
    %v1793 = vld [vmem:[%s4 + $0xd0] sm:$0xff]
    %v1794 = vld [vmem:[%s4 + $0xd8] sm:$0xff]
    %v1795 = vld [vmem:[%s4 + $0xe0] sm:$0xff]
    %v1796 = vld [vmem:[%s4 + $0xe8] sm:$0xff]
    %v1797 = vld [vmem:[%s4 + $0xf0] sm:$0xff]
    %v1798 = vld [vmem:[%s4 + $0xf8] sm:$0xff]
    %v1800 = vsel %vm129, %v1765, 0
    %v1803 = vsel %vm129, %v1766, 0
    %1805 = vmatprep.subr.mxu0 %v1768
    %1806 = vmatpush1.msra.mxu0 %v1767
    %1807 = vmatprep.subr.mxu0 %v1772
    %1808 = vmatpush1.msra.mxu0 %v1771
    %1809 = vmatprep.subr.mxu0 %v1776
    %1810 = vmatpush1.msra.mxu0 %v1775
    %1811 = vmatprep.subr.mxu0 %v1780
    %1812 = vmatpush1.msra.mxu0 %v1779
    %1813 = vmatprep.subr.mxu0 %v1784
    %1814 = vmatpush1.msra.mxu0 %v1783
    %1815 = vmatprep.subr.mxu0 %v1788
    %1816 = vmatpush1.msra.mxu0 %v1787
    %1817 = vmatprep.subr.mxu0 %v1792
    %1818 = vmatpush1.msra.mxu0 %v1791
    %1819 = vmatprep.subr.mxu0 %v1796
    %1820 = vmatpush1.msra.mxu0 %v1795
    %1821 = vmatprep.subr.mxu0 0.0
    %1822 = vmatpush1.msra.mxu0 0.0
    %1823 = vmatprep.subr.mxu0 0.0
    %1824 = vmatpush1.msra.mxu0 0.0
    %1825 = vmatprep.subr.mxu0 0.0
    %1826 = vmatpush1.msra.mxu0 0.0
    %1827 = vmatprep.subr.mxu0 0.0
    %1828 = vmatpush1.msra.mxu0 0.0
    %1829 = vmatprep.subr.mxu0 0.0
    %1830 = vmatpush1.msra.mxu0 0.0
    %1831 = vmatprep.subr.mxu0 0.0
    %1832 = vmatpush1.msra.mxu0 0.0
    %1833 = vmatprep.subr.mxu0 0.0
    %1834 = vmatpush1.msra.mxu0 0.0
    %1835 = vmatprep.subr.mxu0 0.0
    %1836 = vmatpush1.msra.mxu0 0.0
    %1837 = vmatprep.subr.mxu0 0.0
    %1838 = vmatpush1.msra.mxu0 0.0
    %1839 = vmatprep.subr.mxu0 0.0
    %1840 = vmatpush1.msra.mxu0 0.0
    %1841 = vmatprep.subr.mxu0 0.0
    %1842 = vmatpush1.msra.mxu0 0.0
    %1843 = vmatprep.subr.mxu0 0.0
    %1844 = vmatpush1.msra.mxu0 0.0
    %1845 = vmatprep.subr.mxu0 0.0
    %1846 = vmatpush1.msra.mxu0 0.0
    %1847 = vmatprep.subr.mxu0 0.0
    %1848 = vmatpush1.msra.mxu0 0.0
    %1849 = vmatprep.subr.mxu0 0.0
    %1850 = vmatpush1.msra.mxu0 0.0
    %1851 = vmatprep.subr.mxu0 0.0
    %1852 = vmatpush1.msra.mxu0 0.0
    %1853 = vmatprep.subr.mxu0 0.0
    %1854 = vmatpush1.msra.mxu0 0.0
    %1855 = vmatprep.subr.mxu0 0.0
    %1856 = vmatpush1.msra.mxu0 0.0
    %1857 = vmatprep.subr.mxu0 0.0
    %1858 = vmatpush1.msra.mxu0 0.0
    %1859 = vmatprep.subr.mxu0 0.0
    %1860 = vmatpush1.msra.mxu0 0.0
    %1861 = vmatprep.subr.mxu0 0.0
    %1862 = vmatpush1.msra.mxu0 0.0
    %1863 = vmatprep.subr.mxu0 0.0
    %1864 = vmatpush1.msra.mxu0 0.0
    %1865 = vmatprep.subr.mxu0 0.0
    %1866 = vmatpush1.msra.mxu0 0.0
    %1867 = vmatprep.subr.mxu0 0.0
    %1868 = vmatpush1.msra.mxu0 0.0
    %1869 = vmatprep.mubr.f32.mxu0 0.0
    %1870 = vmatmul.mubr.f32.gmra.mrb[0].mxu0 %v1800
    %v1871 = vpop.f32.mrb[0].mxu0
    %v1872 = vadd.f32 0.0, %v1871
    %v1873 = vpop.f32.mrb[0].mxu0
    %v1874 = vadd.f32 0.0, %v1873
    %1875 = vmatprep.mubr.f32.mxu0 0.0
    %1876 = vmatmul.mubr.f32.gmra.mrb[0].mxu0 %v1803
    %v1877 = vpop.f32.mrb[0].mxu0
    %v1878 = vadd.f32 0.0, %v1877
    %v1879 = vpop.f32.mrb[0].mxu0
    %v1880 = vadd.f32 0.0, %v1879
    %1881 = vdwg.mxu0
    %1882 = vmatprep.subr.mxu0 %v1770
    %1883 = vmatpush1.msra.mxu0 %v1769
    %1884 = vmatprep.subr.mxu0 %v1774
    %1885 = vmatpush1.msra.mxu0 %v1773
    %1886 = vmatprep.subr.mxu0 %v1778
    %1887 = vmatpush1.msra.mxu0 %v1777
    %1888 = vmatprep.subr.mxu0 %v1782
    %1889 = vmatpush1.msra.mxu0 %v1781
    %1890 = vmatprep.subr.mxu0 %v1786
    %1891 = vmatpush1.msra.mxu0 %v1785
    %1892 = vmatprep.subr.mxu0 %v1790
    %1893 = vmatpush1.msra.mxu0 %v1789
    %1894 = vmatprep.subr.mxu0 %v1794
    %1895 = vmatpush1.msra.mxu0 %v1793
    %1896 = vmatprep.subr.mxu0 %v1798
    %1897 = vmatpush1.msra.mxu0 %v1797
    %1898 = vmatprep.subr.mxu0 0.0
    %1899 = vmatpush1.msra.mxu0 0.0
    %1900 = vmatprep.subr.mxu0 0.0
    %1901 = vmatpush1.msra.mxu0 0.0
    %1902 = vmatprep.subr.mxu0 0.0
    %1903 = vmatpush1.msra.mxu0 0.0
    %1904 = vmatprep.subr.mxu0 0.0
    %1905 = vmatpush1.msra.mxu0 0.0
    %1906 = vmatprep.subr.mxu0 0.0
    %1907 = vmatpush1.msra.mxu0 0.0
    %1908 = vmatprep.subr.mxu0 0.0
    %1909 = vmatpush1.msra.mxu0 0.0
    %1910 = vmatprep.subr.mxu0 0.0
    %1911 = vmatpush1.msra.mxu0 0.0
    %1912 = vmatprep.subr.mxu0 0.0
    %1913 = vmatpush1.msra.mxu0 0.0
    %1914 = vmatprep.subr.mxu0 0.0
    %1915 = vmatpush1.msra.mxu0 0.0
    %1916 = vmatprep.subr.mxu0 0.0
    %1917 = vmatpush1.msra.mxu0 0.0
    %1918 = vmatprep.subr.mxu0 0.0
    %1919 = vmatpush1.msra.mxu0 0.0
    %1920 = vmatprep.subr.mxu0 0.0
    %1921 = vmatpush1.msra.mxu0 0.0
    %1922 = vmatprep.subr.mxu0 0.0
    %1923 = vmatpush1.msra.mxu0 0.0
    %1924 = vmatprep.subr.mxu0 0.0
    %1925 = vmatpush1.msra.mxu0 0.0
    %1926 = vmatprep.subr.mxu0 0.0
    %1927 = vmatpush1.msra.mxu0 0.0
    %1928 = vmatprep.subr.mxu0 0.0
    %1929 = vmatpush1.msra.mxu0 0.0
    %1930 = vmatprep.subr.mxu0 0.0
    %1931 = vmatpush1.msra.mxu0 0.0
    %1932 = vmatprep.subr.mxu0 0.0
    %1933 = vmatpush1.msra.mxu0 0.0
    %1934 = vmatprep.subr.mxu0 0.0
    %1935 = vmatpush1.msra.mxu0 0.0
    %1936 = vmatprep.subr.mxu0 0.0
    %1937 = vmatpush1.msra.mxu0 0.0
    %1938 = vmatprep.subr.mxu0 0.0
    %1939 = vmatpush1.msra.mxu0 0.0
    %1940 = vmatprep.subr.mxu0 0.0
    %1941 = vmatpush1.msra.mxu0 0.0
    %1942 = vmatprep.subr.mxu0 0.0
    %1943 = vmatpush1.msra.mxu0 0.0
    %1944 = vmatprep.subr.mxu0 0.0
    %1945 = vmatpush1.msra.mxu0 0.0
    %1946 = vmatprep.mubr.f32.mxu0 0.0
    %1947 = vmatmul.mubr.f32.gmra.mrb[0].mxu0 %v1800
    %v1948 = vpop.f32.mrb[0].mxu0
    %v1949 = vadd.f32 0.0, %v1948
    %v1950 = vpop.f32.mrb[0].mxu0
    %v1951 = vadd.f32 0.0, %v1950
    %1952 = vmatprep.mubr.f32.mxu0 0.0
    %1953 = vmatmul.mubr.f32.gmra.mrb[0].mxu0 %v1803
    %v1954 = vpop.f32.mrb[0].mxu0
    %v1955 = vadd.f32 0.0, %v1954
    %v1956 = vpop.f32.mrb[0].mxu0
    %v1957 = vadd.f32 0.0, %v1956
    %1958 = vdwg.mxu0
    %v1959 = vxor.u32 %v1872, 2147483648
    %v1960 = vxor.u32 %v1874, 2147483648
    %v1961 = vxor.u32 %v1878, 2147483648
    %v1962 = vxor.u32 %v1880, 2147483648
    %v1963 = vmul.f32 %v1959, 1.442695
    %v1964 = vpow.pop %v1963
    %v1965 = vmul.f32 %v1960, 1.442695
    %v1966 = vpow.pop %v1965
    %v1967 = vmul.f32 %v1961, 1.442695
    %v1968 = vpow.pop %v1967
    %v1969 = vmul.f32 %v1962, 1.442695
    %v1970 = vpow.pop %v1969
    %v1971 = vadd.f32 %v1964, 1.0
    %v1972 = vadd.f32 %v1966, 1.0
    %v1973 = vadd.f32 %v1968, 1.0
    %v1974 = vadd.f32 %v1970, 1.0
    %v1975 = vrcp.pop %v1971
    %v1976 = vmul.f32 1.0, %v1975
    %v1977 = vrcp.pop %v1972
    %v1978 = vmul.f32 1.0, %v1977
    %v1979 = vrcp.pop %v1973
    %v1980 = vmul.f32 1.0, %v1979
    %v1981 = vrcp.pop %v1974
    %v1982 = vmul.f32 1.0, %v1981
    %v1983 = vmul.f32 %v1872, %v1976
    %v1984 = vmul.f32 %v1874, %v1978
    %v1985 = vmul.f32 %v1878, %v1980
    %v1986 = vmul.f32 %v1880, %v1982
    %v1987 = vmul.f32 %v1983, %v1949
    %v1988 = vmul.f32 %v1984, %v1951
    %v1989 = vmul.f32 %v1985, %v1955
    %v1990 = vmul.f32 %v1986, %v1957
    %v1991 = vld [vmem:[%s5] sm:$0xff]
    %v1992 = vld [vmem:[%s5 + $0x8] sm:$0xff]
    %v1993 = vld [vmem:[%s5 + $0x10] sm:$0xff]
    %v1994 = vld [vmem:[%s5 + $0x18] sm:$0xff]
    %v1995 = vld [vmem:[%s5 + $0x20] sm:$0xff]
    %v1996 = vld [vmem:[%s5 + $0x28] sm:$0xff]
    %v1997 = vld [vmem:[%s5 + $0x30] sm:$0xff]
    %v1998 = vld [vmem:[%s5 + $0x38] sm:$0xff]
    %v1999 = vld [vmem:[%s5 + $0x40] sm:$0xff]
    %v2000 = vld [vmem:[%s5 + $0x48] sm:$0xff]
    %v2001 = vld [vmem:[%s5 + $0x50] sm:$0xff]
    %v2002 = vld [vmem:[%s5 + $0x58] sm:$0xff]
    %v2003 = vld [vmem:[%s5 + $0x60] sm:$0xff]
    %v2004 = vld [vmem:[%s5 + $0x68] sm:$0xff]
    %v2005 = vld [vmem:[%s5 + $0x70] sm:$0xff]
    %v2006 = vld [vmem:[%s5 + $0x78] sm:$0xff]
    %v2007 = vld [vmem:[%s5 + $0x80] sm:$0xff]
    %v2008 = vld [vmem:[%s5 + $0x88] sm:$0xff]
    %v2009 = vld [vmem:[%s5 + $0x90] sm:$0xff]
    %v2010 = vld [vmem:[%s5 + $0x98] sm:$0xff]
    %v2011 = vld [vmem:[%s5 + $0xa0] sm:$0xff]
    %v2012 = vld [vmem:[%s5 + $0xa8] sm:$0xff]
    %v2013 = vld [vmem:[%s5 + $0xb0] sm:$0xff]
    %v2014 = vld [vmem:[%s5 + $0xb8] sm:$0xff]
    %v2015 = vld [vmem:[%s5 + $0xc0] sm:$0xff]
    %v2016 = vld [vmem:[%s5 + $0xc8] sm:$0xff]
    %v2017 = vld [vmem:[%s5 + $0xd0] sm:$0xff]
    %v2018 = vld [vmem:[%s5 + $0xd8] sm:$0xff]
    %v2019 = vld [vmem:[%s5 + $0xe0] sm:$0xff]
    %v2020 = vld [vmem:[%s5 + $0xe8] sm:$0xff]
    %v2021 = vld [vmem:[%s5 + $0xf0] sm:$0xff]
    %v2022 = vld [vmem:[%s5 + $0xf8] sm:$0xff]
    %2023 = vmatprep.subr.mxu0 0.0
    %2024 = vmatpush1.msra.mxu0 %v1991
    %2025 = vmatprep.subr.mxu0 0.0
    %2026 = vmatpush1.msra.mxu0 %v1992
    %2027 = vmatprep.subr.mxu0 0.0
    %2028 = vmatpush1.msra.mxu0 %v1993
    %2029 = vmatprep.subr.mxu0 0.0
    %2030 = vmatpush1.msra.mxu0 %v1994
    %2031 = vmatprep.subr.mxu0 0.0
    %2032 = vmatpush1.msra.mxu0 %v1995
    %2033 = vmatprep.subr.mxu0 0.0
    %2034 = vmatpush1.msra.mxu0 %v1996
    %2035 = vmatprep.subr.mxu0 0.0
    %2036 = vmatpush1.msra.mxu0 %v1997
    %2037 = vmatprep.subr.mxu0 0.0
    %2038 = vmatpush1.msra.mxu0 %v1998
    %2039 = vmatprep.subr.mxu0 0.0
    %2040 = vmatpush1.msra.mxu0 %v1999
    %2041 = vmatprep.subr.mxu0 0.0
    %2042 = vmatpush1.msra.mxu0 %v2000
    %2043 = vmatprep.subr.mxu0 0.0
    %2044 = vmatpush1.msra.mxu0 %v2001
    %2045 = vmatprep.subr.mxu0 0.0
    %2046 = vmatpush1.msra.mxu0 %v2002
    %2047 = vmatprep.subr.mxu0 0.0
    %2048 = vmatpush1.msra.mxu0 %v2003
    %2049 = vmatprep.subr.mxu0 0.0
    %2050 = vmatpush1.msra.mxu0 %v2004
    %2051 = vmatprep.subr.mxu0 0.0
    %2052 = vmatpush1.msra.mxu0 %v2005
    %2053 = vmatprep.subr.mxu0 0.0
    %2054 = vmatpush1.msra.mxu0 %v2006
    %2055 = vmatprep.subr.mxu0 0.0
    %2056 = vmatpush1.msra.mxu0 %v2007
    %2057 = vmatprep.subr.mxu0 0.0
    %2058 = vmatpush1.msra.mxu0 %v2008
    %2059 = vmatprep.subr.mxu0 0.0
    %2060 = vmatpush1.msra.mxu0 %v2009
    %2061 = vmatprep.subr.mxu0 0.0
    %2062 = vmatpush1.msra.mxu0 %v2010
    %2063 = vmatprep.subr.mxu0 0.0
    %2064 = vmatpush1.msra.mxu0 %v2011
    %2065 = vmatprep.subr.mxu0 0.0
    %2066 = vmatpush1.msra.mxu0 %v2012
    %2067 = vmatprep.subr.mxu0 0.0
    %2068 = vmatpush1.msra.mxu0 %v2013
    %2069 = vmatprep.subr.mxu0 0.0
    %2070 = vmatpush1.msra.mxu0 %v2014
    %2071 = vmatprep.subr.mxu0 0.0
    %2072 = vmatpush1.msra.mxu0 %v2015
    %2073 = vmatprep.subr.mxu0 0.0
    %2074 = vmatpush1.msra.mxu0 %v2016
    %2075 = vmatprep.subr.mxu0 0.0
    %2076 = vmatpush1.msra.mxu0 %v2017
    %2077 = vmatprep.subr.mxu0 0.0
    %2078 = vmatpush1.msra.mxu0 %v2018
    %2079 = vmatprep.subr.mxu0 0.0
    %2080 = vmatpush1.msra.mxu0 %v2019
    %2081 = vmatprep.subr.mxu0 0.0
    %2082 = vmatpush1.msra.mxu0 %v2020
    %2083 = vmatprep.subr.mxu0 0.0
    %2084 = vmatpush1.msra.mxu0 %v2021
    %2085 = vmatprep.subr.mxu0 0.0
    %2086 = vmatpush1.msra.mxu0 %v2022
    %2087 = vmatprep.mubr.f32.mxu0 %v1988
    %2088 = vmatmul.mubr.f32.gmra.mrb[0].mxu0 %v1987
    %v2089 = vpop.f32.mrb[0].mxu0
    %v2090 = vadd.f32 0.0, %v2089
    %v2091 = vpop.f32.mrb[0].mxu0
    %2092 = vmatprep.mubr.f32.mxu0 %v1990
    %2093 = vmatmul.mubr.f32.gmra.mrb[0].mxu0 %v1989
    %v2094 = vpop.f32.mrb[0].mxu0
    %v2095 = vadd.f32 0.0, %v2094
    %v2096 = vpop.f32.mrb[0].mxu0
    %2097 = vdwg.mxu0
    %v2098 = vadd.f32 %v1743, %v2090
    %v2099 = vadd.f32 %v1744, %v2095
    %2100 = vst.msk [vmem:[#allocation10] sm:$0xff] %vm129, %v2098
    %2101 = vst.msk [vmem:[#allocation10 + $0x8] sm:$0xff] %vm129, %v2099
    // Predicated region
    $region54: #{tpu_custom_call.1} parent=1 // pred_check
      _
    $region55: #{tpu_custom_call.1} parent=1 // pred_check_branch
      %2103 = sbr.rel (0) target = $region57
    $region56: #{tpu_custom_call.1} parent=1 // pred_region
      %s2105 = ssub.s32 256, 256
      %2106 = vsyncadd [#allocation4], %s2105
      %s2107 = sshll.u32 [#allocation10], 4
      %s2108 = int_to_ptr.vmem [resolvable:$true] %s2107
      %2113 = dma.vmem_to_hbm [thread:$0]  %s2108, 256, %s9, [#allocation4], 128, 128, 8
    $region57: #{tpu_custom_call.1} parent=1 // pred_fallthru
      _
    // Predicated region
    $region58: #{tpu_custom_call.1} parent=1 // pred_check
      _
    $region59: #{tpu_custom_call.1} parent=1 // pred_check_branch
      %2115 = sbr.rel (0) target = $region61
    $region60: #{tpu_custom_call.1} parent=1 // pred_region
      %2116 = dma.done [#allocation4], 256
    $region61: #{tpu_custom_call.1} parent=1 // pred_fallthru
      _
    %2117 = vsyncpa [#allocation3], 1
    %2118 = vsyncpa [#allocation6], 1
    %2119 = vsyncpa [#allocation9], 1
    %2120 = vsyncpa [#allocation4], 1

</llo_original>
